<compile_context>
chip_gen: v7x
topology: tpu7x:2x2x1
jax: 0.10.0
libtpu: 0.0.40
codegen_flags: <defaults>
</compile_context>

<pallas_src>
from functools import partial

import jax
import jax.numpy as jnp
from jax.experimental import pallas as pl
from jax.experimental.pallas import tpu as pltpu

# ---------------------------------------------------------------------------
# Small config consistent with the module (num_nodes shrunk for the demo).
# ---------------------------------------------------------------------------
NODE_FEAT   = 1     # node_feature_size
HID_GCN     = 2     # hidden_dim_gcn
HID_GRU     = 4     # hidden_dim_gru
GRU_LAYERS  = 2     # gru_layers (kernel hard-codes 2 stacked cells)
OUTPUT_SIZE = 1
NUM_NODES   = 16    # num_nodes (207 in the PyTorch default)
GRAF_LAYERS = 1
BATCH       = 2
SEQ_LEN     = 8

GRU_IN  = HID_GCN * NUM_NODES       # 32
GRU_HID = HID_GRU * NUM_NODES       # 64
FC_OUT  = OUTPUT_SIZE * NUM_NODES   # 16

# NOTE: at the real num_nodes=207 config (GRU_HID=828) pad the hidden dim up
# to a multiple of 128 (e.g. 896) in the host-side weight prep so the gate
# packing / lane slicing below stays vreg-aligned.


# ---------------------------------------------------------------------------
# The single fused kernel.
#
#   x_ref    : (T*B, N*F)   time-major flattened node features (f32)
#   wf_ref   : (N*F, 3H)    GCN fold composed into the layer-0 input
#                           projection (gate columns packed r|z|n, f32)
#   bf_ref   : (1, 3H)      folded bias (b_gcn @ W_ih0 + b_ih0)
#   whh0/wih1/whh1 : (H, 3H)  fused per-path weights, bf16
#   bhh0/bih1/bhh1 : (1, 3H)  biases, f32
#   fcw/fcb  : (H, OUT_PAD) / (1, OUT_PAD)  final linear (zero-padded to 128)
#   out_ref  : (B, OUT_PAD)
# ---------------------------------------------------------------------------
def _fused_kernel(x_ref, wf_ref, bf_ref,
                  whh0_ref, bhh0_ref,
                  wih1_ref, bih1_ref,
                  whh1_ref, bhh1_ref,
                  fcw_ref, fcb_ref, out_ref,
                  *, seq_len, batch, hid):
    f32 = jnp.float32
    bf16 = jnp.bfloat16
    H = hid
    H2 = 2 * hid

    # ---- GCN + layer-0 input projection, folded on the host --------------
    # One f32 matmul covering every (t, b) pair; outside the serial chain.
    gi0_all = (jnp.dot(x_ref[...], wf_ref[...], preferred_element_type=f32)
               + bf_ref[...])                               # (T*B, 3H)

    # ---- hoist weight / bias loads once (not per unrolled step) ----------
    whh0 = whh0_ref[...]          # (H, 3H) bf16
    wih1 = wih1_ref[...]
    whh1 = whh1_ref[...]
    bhh0 = bhh0_ref[...]          # (1, 3H) f32
    bih1 = bih1_ref[...]
    bhh1 = bhh1_ref[...]

    h0 = jnp.zeros((batch, hid), f32)
    h1 = jnp.zeros((batch, hid), f32)

    def cell(gi, h, whh_bf16, bhh):
        # ONE fused (r|z|n) hidden-path matmul: bf16 operands, f32 accumulate.
        gh = (jnp.dot(h.astype(bf16), whh_bf16, preferred_element_type=f32)
              + bhh)                                         # (B, 3H)
        # one sigmoid over the packed r|z 2H-lane slice, tanh for n only
        rz = jax.nn.sigmoid(gi[:, :H2] + gh[:, :H2])
        r = rz[:, :H]
        z = rz[:, H:]
        n = jnp.tanh(gi[:, H2:] + r * gh[:, H2:])
        return (1.0 - z) * n + z * h

    # Serial recurrence; statically unrolled (seq_len small & fixed) so the
    # LLO scheduler sees the full dependence chain and can overlap the
    # layer-0 chain of step t+1 with the layer-1 chain of step t.
    for t in range(seq_len):
        s = slice(t * batch, (t + 1) * batch)                # rows of step t
        h0 = cell(gi0_all[s], h0, whh0, bhh0)
        # layer 1: input is h0 of the same step -> cannot be hoisted
        gi1 = (jnp.dot(h0.astype(bf16), wih1, preferred_element_type=f32)
               + bih1)
        h1 = cell(gi1, h1, whh1, bhh1)

    # ---- final Linear; single unmasked 128-lane store ---------------------
    out_ref[...] = (jnp.dot(h1, fcw_ref[...], preferred_element_type=f32)
                    + fcb_ref[...])


# ---------------------------------------------------------------------------
# Parameter preparation (tiny, parameter-only XLA work done once per call).
# ---------------------------------------------------------------------------
def gcn_normalized_adjacency(edge_index, num_nodes):
    # Faithful to GCNConv with the edge_index as given (no symmetrization),
    # plus self loops and symmetric normalization.
    src = edge_index[0]
    dst = edge_index[1]
    a = jnp.zeros((num_nodes, num_nodes), jnp.float32).at[dst, src].add(1.0)
    a = a + jnp.eye(num_nodes, dtype=jnp.float32)
    deg = a.sum(axis=1)
    d_inv_sqrt = jnp.where(deg > 0, 1.0 / jnp.sqrt(deg), 0.0)
    return d_inv_sqrt[:, None] * a * d_inv_sqrt[None, :]


def _fold_gcn(a_norm, params):
    """Fold adjacency + GCN weights into one affine map on flattened graphs.

    For each graph g:  flat(A_norm @ (X_g W) + b) = flat(X_g) @ kron(A^T, W)
                                                    + tile(b, N)
    Both GCN layers are affine (no activation in the module), so graf_layers==2
    composes into the same single (matrix, bias) pair.
    """
    n = a_norm.shape[0]
    m = jnp.kron(a_norm.T, params["gcn_w1"])            # (N*F, N*Hg)
    b = jnp.tile(params["gcn_b1"], n)                    # (N*Hg,)
    if GRAF_LAYERS == 2:
        m2 = jnp.kron(a_norm.T, params["gcn_w2"])        # (N*Hg, N*Hg)
        b = b @ m2 + jnp.tile(params["gcn_b2"], n)
        m = m @ m2
    return m, b.reshape(1, -1)


# ---------------------------------------------------------------------------
# Full forward pass: one pallas_call, no grid, everything VMEM resident.
# ---------------------------------------------------------------------------
def gcn_gru_forward(params, graph_sequence, edge_index):
    B, T, N, F = graph_sequence.shape
    H = GRU_HID

    a_norm = gcn_normalized_adjacency(edge_index, N)
    m_gcn, b_gcn = _fold_gcn(a_norm, params)             # (N*F, N*Hg), (1, N*Hg)

    wih0, whh0, bih0, bhh0, wih1, whh1, bih1, bhh1 = params["gru"]

    # Fold the GCN affine map straight into the layer-0 input-to-hidden
    # projection (parameter-only host work):
    #   gi0 = flat(x) @ (m_gcn @ W_ih0) + (b_gcn @ W_ih0 + b_ih0)
    wf = m_gcn @ wih0                                     # (N*F, 3H) f32
    bf = b_gcn @ wih0 + bih0                              # (1, 3H)   f32

    # bf16 operands for the in-recurrence matmuls (f32 accumulation in kernel).
    whh0_b = whh0.astype(jnp.bfloat16)
    wih1_b = wih1.astype(jnp.bfloat16)
    whh1_b = whh1.astype(jnp.bfloat16)

    # Pad the FC output to a full 128-lane store; sliced back below.
    out_pad = ((FC_OUT + 127) // 128) * 128
    fc_w = jnp.zeros((H, out_pad), jnp.float32).at[:, :FC_OUT].set(params["fc_w"])
    fc_b = jnp.zeros((1, out_pad), jnp.float32).at[:, :FC_OUT].set(
        params["fc_b"].reshape(1, -1))

    # time-major flattened node features: row = t*B + b (contiguous per step)
    x_tm = jnp.transpose(graph_sequence, (1, 0, 2, 3)).reshape(T * B, N * F)
    x_tm = x_tm.astype(jnp.float32)

    vmem = pl.BlockSpec(memory_space=pltpu.MemorySpace.VMEM)
    kernel = partial(_fused_kernel, seq_len=T, batch=B, hid=H)

    out = pl.pallas_call(
        kernel,
        out_shape=jax.ShapeDtypeStruct((B, out_pad), jnp.float32),
        in_specs=[vmem] * 11,
        out_specs=vmem,
        # Explicit scoped-VMEM budget: negligible at demo size; at the real
        # 207-node config bf16 weights are ~12-15 MiB, so 32 MiB keeps the
        # fully-resident no-grid design compiling on v5e/v6e/v7x.
        compiler_params=pltpu.CompilerParams(vmem_limit_bytes=32 * 1024 * 1024),
    )(x_tm, wf, bf,
      whh0_b, bhh0,
      wih1_b, bih1,
      whh1_b, bhh1,
      fc_w, fc_b)

    return out[:, :FC_OUT].reshape(B, N, OUTPUT_SIZE)


# ---------------------------------------------------------------------------
# Pure-JAX reference (same math, f32 throughout, no Pallas) for correctness.
# ---------------------------------------------------------------------------
def reference_forward(params, graph_sequence, edge_index):
    B, T, N, F = graph_sequence.shape
    a = gcn_normalized_adjacency(edge_index, N)
    x = graph_sequence.reshape(B * T, N, F).astype(jnp.float32)
    h = a @ (x @ params["gcn_w1"]) + params["gcn_b1"]
    if GRAF_LAYERS == 2:
        h = a @ (h @ params["gcn_w2"]) + params["gcn_b2"]
    seq = h.reshape(B, T, N * HID_GCN)

    wih0, whh0, bih0, bhh0, wih1, whh1, bih1, bhh1 = params["gru"]
    H = GRU_HID

    def cell(x, h, wih, whh, bih, bhh):
        gi = x @ wih + bih
        gh = h @ whh + bhh
        r = jax.nn.sigmoid(gi[:, :H] + gh[:, :H])
        z = jax.nn.sigmoid(gi[:, H:2 * H] + gh[:, H:2 * H])
        n = jnp.tanh(gi[:, 2 * H:] + r * gh[:, 2 * H:])
        return (1.0 - z) * n + z * h

    h0 = jnp.zeros((B, H), jnp.float32)
    h1 = jnp.zeros((B, H), jnp.float32)
    for t in range(T):
        h0 = cell(seq[:, t], h0, wih0, whh0, bih0, bhh0)
        h1 = cell(h0, h1, wih1, whh1, bih1, bhh1)

    out = h1 @ params["fc_w"] + params["fc_b"].reshape(1, -1)
    return out.reshape(B, N, OUTPUT_SIZE)


# ---------------------------------------------------------------------------
# Deterministic parameter init (shapes follow the PyTorch module __init__).
# ---------------------------------------------------------------------------
def init_params(key):
    ks = jax.random.split(key, 16)

    def u(k, shape, scale):
        return jax.random.uniform(k, shape, jnp.float32, -scale, scale)

    H = GRU_HID
    s = 1.0 / (H ** 0.5)
    return {
        "gcn_w1": u(ks[0], (NODE_FEAT, HID_GCN), 1.0),
        "gcn_b1": u(ks[1], (HID_GCN,), 0.1),
        "gcn_w2": u(ks[2], (HID_GCN, HID_GCN), 1.0),
        "gcn_b2": u(ks[3], (HID_GCN,), 0.1),
        # GRU layer 0 / layer 1: W_ih^T, W_hh^T, b_ih, b_hh (gate order r,z,n)
        "gru": (
            u(ks[4], (GRU_IN, 3 * H), s), u(ks[5], (H, 3 * H), s),
            u(ks[6], (1, 3 * H), s), u(ks[7], (1, 3 * H), s),
            u(ks[8], (H, 3 * H), s), u(ks[9], (H, 3 * H), s),
            u(ks[10], (1, 3 * H), s), u(ks[11], (1, 3 * H), s),
        ),
        "fc_w": u(ks[12], (GRU_HID, FC_OUT), 1.0 / (GRU_HID ** 0.5)),
        "fc_b": u(ks[13], (FC_OUT,), 1.0 / (GRU_HID ** 0.5)),
    }


if __name__ == "__main__":
    key = jax.random.PRNGKey(0)
    kp, kx = jax.random.split(key)
    params = init_params(kp)

    graph_sequence = jax.random.normal(
        kx, (BATCH, SEQ_LEN, NUM_NODES, NODE_FEAT), jnp.float32)

    # Ring graph edge_index (2, E). The per-graph offset batching of the
    # PyTorch code is equivalent to reusing the same normalized adjacency.
    src = jnp.arange(NUM_NODES, dtype=jnp.int32)
    dst = (src + 1) % NUM_NODES
    edge_index = jnp.stack([src, dst], axis=0)

    out = jax.jit(partial(gcn_gru_forward, params))(graph_sequence, edge_index)
    out = jax.block_until_ready(out)

    ref = reference_forward(params, graph_sequence, edge_index)
    assert out.shape == (BATCH, NUM_NODES, OUTPUT_SIZE)
    # Tolerance loosened vs. pure-f32 because the in-recurrence matmuls use
    # bf16 operands (f32 accumulation); error stays well below this bound.
    assert jnp.allclose(out, ref, atol=2e-2, rtol=2e-2)

    print("KERNEL_OK")
</pallas_src>

<mosaic_0001>
module attributes {stable_mosaic.version = 11 : i64} {
  func.func private @main(%arg0: i32) attributes {dimension_semantics = [#tpu.dimension_semantics<core_parallel>], iteration_bounds = array<i64: 2>, tpu.core_type = #tpu.core_type<sc_scalar_subcore>, window_params = []} {
    return
  }
}

module attributes {stable_mosaic.version = 11 : i64} {
  func.func private @main(%arg0: i32) attributes {dimension_semantics = [#tpu.dimension_semantics<core_parallel>], iteration_bounds = array<i64: 2>, tpu.core_type = #tpu.core_type<sc_scalar_subcore>, window_params = []} {
    return
  }
}

module attributes {stable_mosaic.version = 11 : i64} {
  func.func @_fused_kernel(%arg0: memref<16x16xf32, #tpu.memory_space<vmem>>, %arg1: memref<16x192xf32, #tpu.memory_space<vmem>>, %arg2: memref<1x192xf32, #tpu.memory_space<vmem>>, %arg3: memref<64x192xbf16, #tpu.memory_space<vmem>>, %arg4: memref<1x192xf32, #tpu.memory_space<vmem>>, %arg5: memref<64x192xbf16, #tpu.memory_space<vmem>>, %arg6: memref<1x192xf32, #tpu.memory_space<vmem>>, %arg7: memref<64x192xbf16, #tpu.memory_space<vmem>>, %arg8: memref<1x192xf32, #tpu.memory_space<vmem>>, %arg9: memref<64x128xf32, #tpu.memory_space<vmem>>, %arg10: memref<1x128xf32, #tpu.memory_space<vmem>>, %arg11: memref<2x128xf32, #tpu.memory_space<vmem>>) attributes {dimension_semantics = [], scalar_prefetch = 0 : i64, scratch_operands = 0 : i64, tpu.core_type = #tpu.core_type<tc>} {
    %c0 = arith.constant 0 : index
    %c0_0 = arith.constant 0 : index
    %0 = vector.load %arg0[%c0, %c0_0] : memref<16x16xf32, #tpu.memory_space<vmem>>, vector<16x16xf32>
    %c0_1 = arith.constant 0 : index
    %c0_2 = arith.constant 0 : index
    %1 = vector.load %arg1[%c0_1, %c0_2] : memref<16x192xf32, #tpu.memory_space<vmem>>, vector<16x192xf32>
    %cst = arith.constant dense<0.000000e+00> : vector<16x192xf32>
    %2 = tpu.matmul %0, %1, %cst {dimension_numbers = #tpu.dot_dimension_numbers<[1], [0], [0], [1], [0, 0, 1, 1], [], []>} : vector<16x16xf32>, vector<16x192xf32>, vector<16x192xf32> -> vector<16x192xf32>
    %c0_3 = arith.constant 0 : index
    %c0_4 = arith.constant 0 : index
    %3 = vector.load %arg2[%c0_3, %c0_4] : memref<1x192xf32, #tpu.memory_space<vmem>>, vector<1x192xf32>
    %4 = vector.broadcast %3 : vector<1x192xf32> to vector<16x192xf32>
    %5 = arith.addf %2, %4 : vector<16x192xf32>
    %c0_5 = arith.constant 0 : index
    %c0_6 = arith.constant 0 : index
    %6 = vector.load %arg3[%c0_5, %c0_6] : memref<64x192xbf16, #tpu.memory_space<vmem>>, vector<64x192xbf16>
    %c0_7 = arith.constant 0 : index
    %c0_8 = arith.constant 0 : index
    %7 = vector.load %arg5[%c0_7, %c0_8] : memref<64x192xbf16, #tpu.memory_space<vmem>>, vector<64x192xbf16>
    %c0_9 = arith.constant 0 : index
    %c0_10 = arith.constant 0 : index
    %8 = vector.load %arg7[%c0_9, %c0_10] : memref<64x192xbf16, #tpu.memory_space<vmem>>, vector<64x192xbf16>
    %c0_11 = arith.constant 0 : index
    %c0_12 = arith.constant 0 : index
    %9 = vector.load %arg4[%c0_11, %c0_12] : memref<1x192xf32, #tpu.memory_space<vmem>>, vector<1x192xf32>
    %c0_13 = arith.constant 0 : index
    %c0_14 = arith.constant 0 : index
    %10 = vector.load %arg6[%c0_13, %c0_14] : memref<1x192xf32, #tpu.memory_space<vmem>>, vector<1x192xf32>
    %c0_15 = arith.constant 0 : index
    %c0_16 = arith.constant 0 : index
    %11 = vector.load %arg8[%c0_15, %c0_16] : memref<1x192xf32, #tpu.memory_space<vmem>>, vector<1x192xf32>
    %cst_17 = arith.constant 0.000000e+00 : f32
    %12 = vector.broadcast %cst_17 : f32 to vector<2x64xf32>
    %cst_18 = arith.constant 0.000000e+00 : f32
    %13 = vector.broadcast %cst_18 : f32 to vector<2x64xf32>
    %14 = vector.extract_strided_slice %5 {offsets = [0, 0], sizes = [2, 192], strides = [1, 1]} : vector<16x192xf32> to vector<2x192xf32>
    %15 = arith.truncf %12 : vector<2x64xf32> to vector<2x64xbf16>
    %cst_19 = arith.constant dense<0.000000e+00> : vector<2x192xf32>
    %16 = tpu.matmul %15, %6, %cst_19 {dimension_numbers = #tpu.dot_dimension_numbers<[1], [0], [0], [1], [0, 0, 1, 1], [], []>} : vector<2x64xbf16>, vector<64x192xbf16>, vector<2x192xf32> -> vector<2x192xf32>
    %17 = vector.broadcast %9 : vector<1x192xf32> to vector<2x192xf32>
    %18 = arith.addf %16, %17 : vector<2x192xf32>
    %19 = vector.extract_strided_slice %14 {offsets = [0, 0], sizes = [2, 128], strides = [1, 1]} : vector<2x192xf32> to vector<2x128xf32>
    %20 = vector.extract_strided_slice %18 {offsets = [0, 0], sizes = [2, 128], strides = [1, 1]} : vector<2x192xf32> to vector<2x128xf32>
    %21 = arith.addf %19, %20 : vector<2x128xf32>
    %22 = arith.negf %21 : vector<2x128xf32>
    %23 = math.exp %22 : vector<2x128xf32>
    %cst_20 = arith.constant 1.000000e+00 : f32
    %24 = vector.broadcast %cst_20 : f32 to vector<2x128xf32>
    %25 = arith.addf %24, %23 : vector<2x128xf32>
    %26 = arith.divf %24, %25 : vector<2x128xf32>
    %27 = vector.extract_strided_slice %26 {offsets = [0, 0], sizes = [2, 64], strides = [1, 1]} : vector<2x128xf32> to vector<2x64xf32>
    %28 = vector.extract_strided_slice %26 {offsets = [0, 64], sizes = [2, 64], strides = [1, 1]} : vector<2x128xf32> to vector<2x64xf32>
    %29 = vector.extract_strided_slice %14 {offsets = [0, 128], sizes = [2, 64], strides = [1, 1]} : vector<2x192xf32> to vector<2x64xf32>
    %30 = vector.extract_strided_slice %18 {offsets = [0, 128], sizes = [2, 64], strides = [1, 1]} : vector<2x192xf32> to vector<2x64xf32>
    %31 = arith.mulf %27, %30 : vector<2x64xf32>
    %32 = arith.addf %29, %31 : vector<2x64xf32>
    %33 = math.tanh %32 : vector<2x64xf32>
    %cst_21 = arith.constant 1.000000e+00 : f32
    %34 = vector.broadcast %cst_21 : f32 to vector<2x64xf32>
    %35 = arith.subf %34, %28 : vector<2x64xf32>
    %36 = arith.mulf %35, %33 : vector<2x64xf32>
    %37 = arith.mulf %28, %12 : vector<2x64xf32>
    %38 = arith.addf %36, %37 : vector<2x64xf32>
    %39 = arith.truncf %38 : vector<2x64xf32> to vector<2x64xbf16>
    %cst_22 = arith.constant dense<0.000000e+00> : vector<2x192xf32>
    %40 = tpu.matmul %39, %7, %cst_22 {dimension_numbers = #tpu.dot_dimension_numbers<[1], [0], [0], [1], [0, 0, 1, 1], [], []>} : vector<2x64xbf16>, vector<64x192xbf16>, vector<2x192xf32> -> vector<2x192xf32>
    %41 = vector.broadcast %10 : vector<1x192xf32> to vector<2x192xf32>
    %42 = arith.addf %40, %41 : vector<2x192xf32>
    %43 = arith.truncf %13 : vector<2x64xf32> to vector<2x64xbf16>
    %cst_23 = arith.constant dense<0.000000e+00> : vector<2x192xf32>
    %44 = tpu.matmul %43, %8, %cst_23 {dimension_numbers = #tpu.dot_dimension_numbers<[1], [0], [0], [1], [0, 0, 1, 1], [], []>} : vector<2x64xbf16>, vector<64x192xbf16>, vector<2x192xf32> -> vector<2x192xf32>
    %45 = vector.broadcast %11 : vector<1x192xf32> to vector<2x192xf32>
    %46 = arith.addf %44, %45 : vector<2x192xf32>
    %47 = vector.extract_strided_slice %42 {offsets = [0, 0], sizes = [2, 128], strides = [1, 1]} : vector<2x192xf32> to vector<2x128xf32>
    %48 = vector.extract_strided_slice %46 {offsets = [0, 0], sizes = [2, 128], strides = [1, 1]} : vector<2x192xf32> to vector<2x128xf32>
    %49 = arith.addf %47, %48 : vector<2x128xf32>
    %50 = arith.negf %49 : vector<2x128xf32>
    %51 = math.exp %50 : vector<2x128xf32>
    %cst_24 = arith.constant 1.000000e+00 : f32
    %52 = vector.broadcast %cst_24 : f32 to vector<2x128xf32>
    %53 = arith.addf %52, %51 : vector<2x128xf32>
    %54 = arith.divf %52, %53 : vector<2x128xf32>
    %55 = vector.extract_strided_slice %54 {offsets = [0, 0], sizes = [2, 64], strides = [1, 1]} : vector<2x128xf32> to vector<2x64xf32>
    %56 = vector.extract_strided_slice %54 {offsets = [0, 64], sizes = [2, 64], strides = [1, 1]} : vector<2x128xf32> to vector<2x64xf32>
    %57 = vector.extract_strided_slice %42 {offsets = [0, 128], sizes = [2, 64], strides = [1, 1]} : vector<2x192xf32> to vector<2x64xf32>
    %58 = vector.extract_strided_slice %46 {offsets = [0, 128], sizes = [2, 64], strides = [1, 1]} : vector<2x192xf32> to vector<2x64xf32>
    %59 = arith.mulf %55, %58 : vector<2x64xf32>
    %60 = arith.addf %57, %59 : vector<2x64xf32>
    %61 = math.tanh %60 : vector<2x64xf32>
    %cst_25 = arith.constant 1.000000e+00 : f32
    %62 = vector.broadcast %cst_25 : f32 to vector<2x64xf32>
    %63 = arith.subf %62, %56 : vector<2x64xf32>
    %64 = arith.mulf %63, %61 : vector<2x64xf32>
    %65 = arith.mulf %56, %13 : vector<2x64xf32>
    %66 = arith.addf %64, %65 : vector<2x64xf32>
    %67 = vector.extract_strided_slice %5 {offsets = [2, 0], sizes = [2, 192], strides = [1, 1]} : vector<16x192xf32> to vector<2x192xf32>
    %68 = arith.truncf %38 : vector<2x64xf32> to vector<2x64xbf16>
    %cst_26 = arith.constant dense<0.000000e+00> : vector<2x192xf32>
    %69 = tpu.matmul %68, %6, %cst_26 {dimension_numbers = #tpu.dot_dimension_numbers<[1], [0], [0], [1], [0, 0, 1, 1], [], []>} : vector<2x64xbf16>, vector<64x192xbf16>, vector<2x192xf32> -> vector<2x192xf32>
    %70 = vector.broadcast %9 : vector<1x192xf32> to vector<2x192xf32>
    %71 = arith.addf %69, %70 : vector<2x192xf32>
    %72 = vector.extract_strided_slice %67 {offsets = [0, 0], sizes = [2, 128], strides = [1, 1]} : vector<2x192xf32> to vector<2x128xf32>
    %73 = vector.extract_strided_slice %71 {offsets = [0, 0], sizes = [2, 128], strides = [1, 1]} : vector<2x192xf32> to vector<2x128xf32>
    %74 = arith.addf %72, %73 : vector<2x128xf32>
    %75 = arith.negf %74 : vector<2x128xf32>
    %76 = math.exp %75 : vector<2x128xf32>
    %cst_27 = arith.constant 1.000000e+00 : f32
    %77 = vector.broadcast %cst_27 : f32 to vector<2x128xf32>
    %78 = arith.addf %77, %76 : vector<2x128xf32>
    %79 = arith.divf %77, %78 : vector<2x128xf32>
    %80 = vector.extract_strided_slice %79 {offsets = [0, 0], sizes = [2, 64], strides = [1, 1]} : vector<2x128xf32> to vector<2x64xf32>
    %81 = vector.extract_strided_slice %79 {offsets = [0, 64], sizes = [2, 64], strides = [1, 1]} : vector<2x128xf32> to vector<2x64xf32>
    %82 = vector.extract_strided_slice %67 {offsets = [0, 128], sizes = [2, 64], strides = [1, 1]} : vector<2x192xf32> to vector<2x64xf32>
    %83 = vector.extract_strided_slice %71 {offsets = [0, 128], sizes = [2, 64], strides = [1, 1]} : vector<2x192xf32> to vector<2x64xf32>
    %84 = arith.mulf %80, %83 : vector<2x64xf32>
    %85 = arith.addf %82, %84 : vector<2x64xf32>
    %86 = math.tanh %85 : vector<2x64xf32>
    %cst_28 = arith.constant 1.000000e+00 : f32
    %87 = vector.broadcast %cst_28 : f32 to vector<2x64xf32>
    %88 = arith.subf %87, %81 : vector<2x64xf32>
    %89 = arith.mulf %88, %86 : vector<2x64xf32>
    %90 = arith.mulf %81, %38 : vector<2x64xf32>
    %91 = arith.addf %89, %90 : vector<2x64xf32>
    %92 = arith.truncf %91 : vector<2x64xf32> to vector<2x64xbf16>
    %cst_29 = arith.constant dense<0.000000e+00> : vector<2x192xf32>
    %93 = tpu.matmul %92, %7, %cst_29 {dimension_numbers = #tpu.dot_dimension_numbers<[1], [0], [0], [1], [0, 0, 1, 1], [], []>} : vector<2x64xbf16>, vector<64x192xbf16>, vector<2x192xf32> -> vector<2x192xf32>
    %94 = vector.broadcast %10 : vector<1x192xf32> to vector<2x192xf32>
    %95 = arith.addf %93, %94 : vector<2x192xf32>
    %96 = arith.truncf %66 : vector<2x64xf32> to vector<2x64xbf16>
    %cst_30 = arith.constant dense<0.000000e+00> : vector<2x192xf32>
    %97 = tpu.matmul %96, %8, %cst_30 {dimension_numbers = #tpu.dot_dimension_numbers<[1], [0], [0], [1], [0, 0, 1, 1], [], []>} : vector<2x64xbf16>, vector<64x192xbf16>, vector<2x192xf32> -> vector<2x192xf32>
    %98 = vector.broadcast %11 : vector<1x192xf32> to vector<2x192xf32>
    %99 = arith.addf %97, %98 : vector<2x192xf32>
    %100 = vector.extract_strided_slice %95 {offsets = [0, 0], sizes = [2, 128], strides = [1, 1]} : vector<2x192xf32> to vector<2x128xf32>
    %101 = vector.extract_strided_slice %99 {offsets = [0, 0], sizes = [2, 128], strides = [1, 1]} : vector<2x192xf32> to vector<2x128xf32>
    %102 = arith.addf %100, %101 : vector<2x128xf32>
    %103 = arith.negf %102 : vector<2x128xf32>
    %104 = math.exp %103 : vector<2x128xf32>
    %cst_31 = arith.constant 1.000000e+00 : f32
    %105 = vector.broadcast %cst_31 : f32 to vector<2x128xf32>
    %106 = arith.addf %105, %104 : vector<2x128xf32>
    %107 = arith.divf %105, %106 : vector<2x128xf32>
    %108 = vector.extract_strided_slice %107 {offsets = [0, 0], sizes = [2, 64], strides = [1, 1]} : vector<2x128xf32> to vector<2x64xf32>
    %109 = vector.extract_strided_slice %107 {offsets = [0, 64], sizes = [2, 64], strides = [1, 1]} : vector<2x128xf32> to vector<2x64xf32>
    %110 = vector.extract_strided_slice %95 {offsets = [0, 128], sizes = [2, 64], strides = [1, 1]} : vector<2x192xf32> to vector<2x64xf32>
    %111 = vector.extract_strided_slice %99 {offsets = [0, 128], sizes = [2, 64], strides = [1, 1]} : vector<2x192xf32> to vector<2x64xf32>
    %112 = arith.mulf %108, %111 : vector<2x64xf32>
    %113 = arith.addf %110, %112 : vector<2x64xf32>
    %114 = math.tanh %113 : vector<2x64xf32>
    %cst_32 = arith.constant 1.000000e+00 : f32
    %115 = vector.broadcast %cst_32 : f32 to vector<2x64xf32>
    %116 = arith.subf %115, %109 : vector<2x64xf32>
    %117 = arith.mulf %116, %114 : vector<2x64xf32>
    %118 = arith.mulf %109, %66 : vector<2x64xf32>
    %119 = arith.addf %117, %118 : vector<2x64xf32>
    %120 = vector.extract_strided_slice %5 {offsets = [4, 0], sizes = [2, 192], strides = [1, 1]} : vector<16x192xf32> to vector<2x192xf32>
    %121 = arith.truncf %91 : vector<2x64xf32> to vector<2x64xbf16>
    %cst_33 = arith.constant dense<0.000000e+00> : vector<2x192xf32>
    %122 = tpu.matmul %121, %6, %cst_33 {dimension_numbers = #tpu.dot_dimension_numbers<[1], [0], [0], [1], [0, 0, 1, 1], [], []>} : vector<2x64xbf16>, vector<64x192xbf16>, vector<2x192xf32> -> vector<2x192xf32>
    %123 = vector.broadcast %9 : vector<1x192xf32> to vector<2x192xf32>
    %124 = arith.addf %122, %123 : vector<2x192xf32>
    %125 = vector.extract_strided_slice %120 {offsets = [0, 0], sizes = [2, 128], strides = [1, 1]} : vector<2x192xf32> to vector<2x128xf32>
    %126 = vector.extract_strided_slice %124 {offsets = [0, 0], sizes = [2, 128], strides = [1, 1]} : vector<2x192xf32> to vector<2x128xf32>
    %127 = arith.addf %125, %126 : vector<2x128xf32>
    %128 = arith.negf %127 : vector<2x128xf32>
    %129 = math.exp %128 : vector<2x128xf32>
    %cst_34 = arith.constant 1.000000e+00 : f32
    %130 = vector.broadcast %cst_34 : f32 to vector<2x128xf32>
    %131 = arith.addf %130, %129 : vector<2x128xf32>
    %132 = arith.divf %130, %131 : vector<2x128xf32>
    %133 = vector.extract_strided_slice %132 {offsets = [0, 0], sizes = [2, 64], strides = [1, 1]} : vector<2x128xf32> to vector<2x64xf32>
    %134 = vector.extract_strided_slice %132 {offsets = [0, 64], sizes = [2, 64], strides = [1, 1]} : vector<2x128xf32> to vector<2x64xf32>
    %135 = vector.extract_strided_slice %120 {offsets = [0, 128], sizes = [2, 64], strides = [1, 1]} : vector<2x192xf32> to vector<2x64xf32>
    %136 = vector.extract_strided_slice %124 {offsets = [0, 128], sizes = [2, 64], strides = [1, 1]} : vector<2x192xf32> to vector<2x64xf32>
    %137 = arith.mulf %133, %136 : vector<2x64xf32>
    %138 = arith.addf %135, %137 : vector<2x64xf32>
    %139 = math.tanh %138 : vector<2x64xf32>
    %cst_35 = arith.constant 1.000000e+00 : f32
    %140 = vector.broadcast %cst_35 : f32 to vector<2x64xf32>
    %141 = arith.subf %140, %134 : vector<2x64xf32>
    %142 = arith.mulf %141, %139 : vector<2x64xf32>
    %143 = arith.mulf %134, %91 : vector<2x64xf32>
    %144 = arith.addf %142, %143 : vector<2x64xf32>
    %145 = arith.truncf %144 : vector<2x64xf32> to vector<2x64xbf16>
    %cst_36 = arith.constant dense<0.000000e+00> : vector<2x192xf32>
    %146 = tpu.matmul %145, %7, %cst_36 {dimension_numbers = #tpu.dot_dimension_numbers<[1], [0], [0], [1], [0, 0, 1, 1], [], []>} : vector<2x64xbf16>, vector<64x192xbf16>, vector<2x192xf32> -> vector<2x192xf32>
    %147 = vector.broadcast %10 : vector<1x192xf32> to vector<2x192xf32>
    %148 = arith.addf %146, %147 : vector<2x192xf32>
    %149 = arith.truncf %119 : vector<2x64xf32> to vector<2x64xbf16>
    %cst_37 = arith.constant dense<0.000000e+00> : vector<2x192xf32>
    %150 = tpu.matmul %149, %8, %cst_37 {dimension_numbers = #tpu.dot_dimension_numbers<[1], [0], [0], [1], [0, 0, 1, 1], [], []>} : vector<2x64xbf16>, vector<64x192xbf16>, vector<2x192xf32> -> vector<2x192xf32>
    %151 = vector.broadcast %11 : vector<1x192xf32> to vector<2x192xf32>
    %152 = arith.addf %150, %151 : vector<2x192xf32>
    %153 = vector.extract_strided_slice %148 {offsets = [0, 0], sizes = [2, 128], strides = [1, 1]} : vector<2x192xf32> to vector<2x128xf32>
    %154 = vector.extract_strided_slice %152 {offsets = [0, 0], sizes = [2, 128], strides = [1, 1]} : vector<2x192xf32> to vector<2x128xf32>
    %155 = arith.addf %153, %154 : vector<2x128xf32>
    %156 = arith.negf %155 : vector<2x128xf32>
    %157 = math.exp %156 : vector<2x128xf32>
    %cst_38 = arith.constant 1.000000e+00 : f32
    %158 = vector.broadcast %cst_38 : f32 to vector<2x128xf32>
    %159 = arith.addf %158, %157 : vector<2x128xf32>
    %160 = arith.divf %158, %159 : vector<2x128xf32>
    %161 = vector.extract_strided_slice %160 {offsets = [0, 0], sizes = [2, 64], strides = [1, 1]} : vector<2x128xf32> to vector<2x64xf32>
    %162 = vector.extract_strided_slice %160 {offsets = [0, 64], sizes = [2, 64], strides = [1, 1]} : vector<2x128xf32> to vector<2x64xf32>
    %163 = vector.extract_strided_slice %148 {offsets = [0, 128], sizes = [2, 64], strides = [1, 1]} : vector<2x192xf32> to vector<2x64xf32>
    %164 = vector.extract_strided_slice %152 {offsets = [0, 128], sizes = [2, 64], strides = [1, 1]} : vector<2x192xf32> to vector<2x64xf32>
    %165 = arith.mulf %161, %164 : vector<2x64xf32>
    %166 = arith.addf %163, %165 : vector<2x64xf32>
    %167 = math.tanh %166 : vector<2x64xf32>
    %cst_39 = arith.constant 1.000000e+00 : f32
    %168 = vector.broadcast %cst_39 : f32 to vector<2x64xf32>
    %169 = arith.subf %168, %162 : vector<2x64xf32>
    %170 = arith.mulf %169, %167 : vector<2x64xf32>
    %171 = arith.mulf %162, %119 : vector<2x64xf32>
    %172 = arith.addf %170, %171 : vector<2x64xf32>
    %173 = vector.extract_strided_slice %5 {offsets = [6, 0], sizes = [2, 192], strides = [1, 1]} : vector<16x192xf32> to vector<2x192xf32>
    %174 = arith.truncf %144 : vector<2x64xf32> to vector<2x64xbf16>
    %cst_40 = arith.constant dense<0.000000e+00> : vector<2x192xf32>
    %175 = tpu.matmul %174, %6, %cst_40 {dimension_numbers = #tpu.dot_dimension_numbers<[1], [0], [0], [1], [0, 0, 1, 1], [], []>} : vector<2x64xbf16>, vector<64x192xbf16>, vector<2x192xf32> -> vector<2x192xf32>
    %176 = vector.broadcast %9 : vector<1x192xf32> to vector<2x192xf32>
    %177 = arith.addf %175, %176 : vector<2x192xf32>
    %178 = vector.extract_strided_slice %173 {offsets = [0, 0], sizes = [2, 128], strides = [1, 1]} : vector<2x192xf32> to vector<2x128xf32>
    %179 = vector.extract_strided_slice %177 {offsets = [0, 0], sizes = [2, 128], strides = [1, 1]} : vector<2x192xf32> to vector<2x128xf32>
    %180 = arith.addf %178, %179 : vector<2x128xf32>
    %181 = arith.negf %180 : vector<2x128xf32>
    %182 = math.exp %181 : vector<2x128xf32>
    %cst_41 = arith.constant 1.000000e+00 : f32
    %183 = vector.broadcast %cst_41 : f32 to vector<2x128xf32>
    %184 = arith.addf %183, %182 : vector<2x128xf32>
    %185 = arith.divf %183, %184 : vector<2x128xf32>
    %186 = vector.extract_strided_slice %185 {offsets = [0, 0], sizes = [2, 64], strides = [1, 1]} : vector<2x128xf32> to vector<2x64xf32>
    %187 = vector.extract_strided_slice %185 {offsets = [0, 64], sizes = [2, 64], strides = [1, 1]} : vector<2x128xf32> to vector<2x64xf32>
    %188 = vector.extract_strided_slice %173 {offsets = [0, 128], sizes = [2, 64], strides = [1, 1]} : vector<2x192xf32> to vector<2x64xf32>
    %189 = vector.extract_strided_slice %177 {offsets = [0, 128], sizes = [2, 64], strides = [1, 1]} : vector<2x192xf32> to vector<2x64xf32>
    %190 = arith.mulf %186, %189 : vector<2x64xf32>
    %191 = arith.addf %188, %190 : vector<2x64xf32>
    %192 = math.tanh %191 : vector<2x64xf32>
    %cst_42 = arith.constant 1.000000e+00 : f32
    %193 = vector.broadcast %cst_42 : f32 to vector<2x64xf32>
    %194 = arith.subf %193, %187 : vector<2x64xf32>
    %195 = arith.mulf %194, %192 : vector<2x64xf32>
    %196 = arith.mulf %187, %144 : vector<2x64xf32>
    %197 = arith.addf %195, %196 : vector<2x64xf32>
    %198 = arith.truncf %197 : vector<2x64xf32> to vector<2x64xbf16>
    %cst_43 = arith.constant dense<0.000000e+00> : vector<2x192xf32>
    %199 = tpu.matmul %198, %7, %cst_43 {dimension_numbers = #tpu.dot_dimension_numbers<[1], [0], [0], [1], [0, 0, 1, 1], [], []>} : vector<2x64xbf16>, vector<64x192xbf16>, vector<2x192xf32> -> vector<2x192xf32>
    %200 = vector.broadcast %10 : vector<1x192xf32> to vector<2x192xf32>
    %201 = arith.addf %199, %200 : vector<2x192xf32>
    %202 = arith.truncf %172 : vector<2x64xf32> to vector<2x64xbf16>
    %cst_44 = arith.constant dense<0.000000e+00> : vector<2x192xf32>
    %203 = tpu.matmul %202, %8, %cst_44 {dimension_numbers = #tpu.dot_dimension_numbers<[1], [0], [0], [1], [0, 0, 1, 1], [], []>} : vector<2x64xbf16>, vector<64x192xbf16>, vector<2x192xf32> -> vector<2x192xf32>
    %204 = vector.broadcast %11 : vector<1x192xf32> to vector<2x192xf32>
    %205 = arith.addf %203, %204 : vector<2x192xf32>
    %206 = vector.extract_strided_slice %201 {offsets = [0, 0], sizes = [2, 128], strides = [1, 1]} : vector<2x192xf32> to vector<2x128xf32>
    %207 = vector.extract_strided_slice %205 {offsets = [0, 0], sizes = [2, 128], strides = [1, 1]} : vector<2x192xf32> to vector<2x128xf32>
    %208 = arith.addf %206, %207 : vector<2x128xf32>
    %209 = arith.negf %208 : vector<2x128xf32>
    %210 = math.exp %209 : vector<2x128xf32>
    %cst_45 = arith.constant 1.000000e+00 : f32
    %211 = vector.broadcast %cst_45 : f32 to vector<2x128xf32>
    %212 = arith.addf %211, %210 : vector<2x128xf32>
    %213 = arith.divf %211, %212 : vector<2x128xf32>
    %214 = vector.extract_strided_slice %213 {offsets = [0, 0], sizes = [2, 64], strides = [1, 1]} : vector<2x128xf32> to vector<2x64xf32>
    %215 = vector.extract_strided_slice %213 {offsets = [0, 64], sizes = [2, 64], strides = [1, 1]} : vector<2x128xf32> to vector<2x64xf32>
    %216 = vector.extract_strided_slice %201 {offsets = [0, 128], sizes = [2, 64], strides = [1, 1]} : vector<2x192xf32> to vector<2x64xf32>
    %217 = vector.extract_strided_slice %205 {offsets = [0, 128], sizes = [2, 64], strides = [1, 1]} : vector<2x192xf32> to vector<2x64xf32>
    %218 = arith.mulf %214, %217 : vector<2x64xf32>
    %219 = arith.addf %216, %218 : vector<2x64xf32>
    %220 = math.tanh %219 : vector<2x64xf32>
    %cst_46 = arith.constant 1.000000e+00 : f32
    %221 = vector.broadcast %cst_46 : f32 to vector<2x64xf32>
    %222 = arith.subf %221, %215 : vector<2x64xf32>
    %223 = arith.mulf %222, %220 : vector<2x64xf32>
    %224 = arith.mulf %215, %172 : vector<2x64xf32>
    %225 = arith.addf %223, %224 : vector<2x64xf32>
    %226 = vector.extract_strided_slice %5 {offsets = [8, 0], sizes = [2, 192], strides = [1, 1]} : vector<16x192xf32> to vector<2x192xf32>
    %227 = arith.truncf %197 : vector<2x64xf32> to vector<2x64xbf16>
    %cst_47 = arith.constant dense<0.000000e+00> : vector<2x192xf32>
    %228 = tpu.matmul %227, %6, %cst_47 {dimension_numbers = #tpu.dot_dimension_numbers<[1], [0], [0], [1], [0, 0, 1, 1], [], []>} : vector<2x64xbf16>, vector<64x192xbf16>, vector<2x192xf32> -> vector<2x192xf32>
    %229 = vector.broadcast %9 : vector<1x192xf32> to vector<2x192xf32>
    %230 = arith.addf %228, %229 : vector<2x192xf32>
    %231 = vector.extract_strided_slice %226 {offsets = [0, 0], sizes = [2, 128], strides = [1, 1]} : vector<2x192xf32> to vector<2x128xf32>
    %232 = vector.extract_strided_slice %230 {offsets = [0, 0], sizes = [2, 128], strides = [1, 1]} : vector<2x192xf32> to vector<2x128xf32>
    %233 = arith.addf %231, %232 : vector<2x128xf32>
    %234 = arith.negf %233 : vector<2x128xf32>
    %235 = math.exp %234 : vector<2x128xf32>
    %cst_48 = arith.constant 1.000000e+00 : f32
    %236 = vector.broadcast %cst_48 : f32 to vector<2x128xf32>
    %237 = arith.addf %236, %235 : vector<2x128xf32>
    %238 = arith.divf %236, %237 : vector<2x128xf32>
    %239 = vector.extract_strided_slice %238 {offsets = [0, 0], sizes = [2, 64], strides = [1, 1]} : vector<2x128xf32> to vector<2x64xf32>
    %240 = vector.extract_strided_slice %238 {offsets = [0, 64], sizes = [2, 64], strides = [1, 1]} : vector<2x128xf32> to vector<2x64xf32>
    %241 = vector.extract_strided_slice %226 {offsets = [0, 128], sizes = [2, 64], strides = [1, 1]} : vector<2x192xf32> to vector<2x64xf32>
    %242 = vector.extract_strided_slice %230 {offsets = [0, 128], sizes = [2, 64], strides = [1, 1]} : vector<2x192xf32> to vector<2x64xf32>
    %243 = arith.mulf %239, %242 : vector<2x64xf32>
    %244 = arith.addf %241, %243 : vector<2x64xf32>
    %245 = math.tanh %244 : vector<2x64xf32>
    %cst_49 = arith.constant 1.000000e+00 : f32
    %246 = vector.broadcast %cst_49 : f32 to vector<2x64xf32>
    %247 = arith.subf %246, %240 : vector<2x64xf32>
    %248 = arith.mulf %247, %245 : vector<2x64xf32>
    %249 = arith.mulf %240, %197 : vector<2x64xf32>
    %250 = arith.addf %248, %249 : vector<2x64xf32>
    %251 = arith.truncf %250 : vector<2x64xf32> to vector<2x64xbf16>
    %cst_50 = arith.constant dense<0.000000e+00> : vector<2x192xf32>
    %252 = tpu.matmul %251, %7, %cst_50 {dimension_numbers = #tpu.dot_dimension_numbers<[1], [0], [0], [1], [0, 0, 1, 1], [], []>} : vector<2x64xbf16>, vector<64x192xbf16>, vector<2x192xf32> -> vector<2x192xf32>
    %253 = vector.broadcast %10 : vector<1x192xf32> to vector<2x192xf32>
    %254 = arith.addf %252, %253 : vector<2x192xf32>
    %255 = arith.truncf %225 : vector<2x64xf32> to vector<2x64xbf16>
    %cst_51 = arith.constant dense<0.000000e+00> : vector<2x192xf32>
    %256 = tpu.matmul %255, %8, %cst_51 {dimension_numbers = #tpu.dot_dimension_numbers<[1], [0], [0], [1], [0, 0, 1, 1], [], []>} : vector<2x64xbf16>, vector<64x192xbf16>, vector<2x192xf32> -> vector<2x192xf32>
    %257 = vector.broadcast %11 : vector<1x192xf32> to vector<2x192xf32>
    %258 = arith.addf %256, %257 : vector<2x192xf32>
    %259 = vector.extract_strided_slice %254 {offsets = [0, 0], sizes = [2, 128], strides = [1, 1]} : vector<2x192xf32> to vector<2x128xf32>
    %260 = vector.extract_strided_slice %258 {offsets = [0, 0], sizes = [2, 128], strides = [1, 1]} : vector<2x192xf32> to vector<2x128xf32>
    %261 = arith.addf %259, %260 : vector<2x128xf32>
    %262 = arith.negf %261 : vector<2x128xf32>
    %263 = math.exp %262 : vector<2x128xf32>
    %cst_52 = arith.constant 1.000000e+00 : f32
    %264 = vector.broadcast %cst_52 : f32 to vector<2x128xf32>
    %265 = arith.addf %264, %263 : vector<2x128xf32>
    %266 = arith.divf %264, %265 : vector<2x128xf32>
    %267 = vector.extract_strided_slice %266 {offsets = [0, 0], sizes = [2, 64], strides = [1, 1]} : vector<2x128xf32> to vector<2x64xf32>
    %268 = vector.extract_strided_slice %266 {offsets = [0, 64], sizes = [2, 64], strides = [1, 1]} : vector<2x128xf32> to vector<2x64xf32>
    %269 = vector.extract_strided_slice %254 {offsets = [0, 128], sizes = [2, 64], strides = [1, 1]} : vector<2x192xf32> to vector<2x64xf32>
    %270 = vector.extract_strided_slice %258 {offsets = [0, 128], sizes = [2, 64], strides = [1, 1]} : vector<2x192xf32> to vector<2x64xf32>
    %271 = arith.mulf %267, %270 : vector<2x64xf32>
    %272 = arith.addf %269, %271 : vector<2x64xf32>
    %273 = math.tanh %272 : vector<2x64xf32>
    %cst_53 = arith.constant 1.000000e+00 : f32
    %274 = vector.broadcast %cst_53 : f32 to vector<2x64xf32>
    %275 = arith.subf %274, %268 : vector<2x64xf32>
    %276 = arith.mulf %275, %273 : vector<2x64xf32>
    %277 = arith.mulf %268, %225 : vector<2x64xf32>
    %278 = arith.addf %276, %277 : vector<2x64xf32>
    %279 = vector.extract_strided_slice %5 {offsets = [10, 0], sizes = [2, 192], strides = [1, 1]} : vector<16x192xf32> to vector<2x192xf32>
    %280 = arith.truncf %250 : vector<2x64xf32> to vector<2x64xbf16>
    %cst_54 = arith.constant dense<0.000000e+00> : vector<2x192xf32>
    %281 = tpu.matmul %280, %6, %cst_54 {dimension_numbers = #tpu.dot_dimension_numbers<[1], [0], [0], [1], [0, 0, 1, 1], [], []>} : vector<2x64xbf16>, vector<64x192xbf16>, vector<2x192xf32> -> vector<2x192xf32>
    %282 = vector.broadcast %9 : vector<1x192xf32> to vector<2x192xf32>
    %283 = arith.addf %281, %282 : vector<2x192xf32>
    %284 = vector.extract_strided_slice %279 {offsets = [0, 0], sizes = [2, 128], strides = [1, 1]} : vector<2x192xf32> to vector<2x128xf32>
    %285 = vector.extract_strided_slice %283 {offsets = [0, 0], sizes = [2, 128], strides = [1, 1]} : vector<2x192xf32> to vector<2x128xf32>
    %286 = arith.addf %284, %285 : vector<2x128xf32>
    %287 = arith.negf %286 : vector<2x128xf32>
    %288 = math.exp %287 : vector<2x128xf32>
    %cst_55 = arith.constant 1.000000e+00 : f32
    %289 = vector.broadcast %cst_55 : f32 to vector<2x128xf32>
    %290 = arith.addf %289, %288 : vector<2x128xf32>
    %291 = arith.divf %289, %290 : vector<2x128xf32>
    %292 = vector.extract_strided_slice %291 {offsets = [0, 0], sizes = [2, 64], strides = [1, 1]} : vector<2x128xf32> to vector<2x64xf32>
    %293 = vector.extract_strided_slice %291 {offsets = [0, 64], sizes = [2, 64], strides = [1, 1]} : vector<2x128xf32> to vector<2x64xf32>
    %294 = vector.extract_strided_slice %279 {offsets = [0, 128], sizes = [2, 64], strides = [1, 1]} : vector<2x192xf32> to vector<2x64xf32>
    %295 = vector.extract_strided_slice %283 {offsets = [0, 128], sizes = [2, 64], strides = [1, 1]} : vector<2x192xf32> to vector<2x64xf32>
    %296 = arith.mulf %292, %295 : vector<2x64xf32>
    %297 = arith.addf %294, %296 : vector<2x64xf32>
    %298 = math.tanh %297 : vector<2x64xf32>
    %cst_56 = arith.constant 1.000000e+00 : f32
    %299 = vector.broadcast %cst_56 : f32 to vector<2x64xf32>
    %300 = arith.subf %299, %293 : vector<2x64xf32>
    %301 = arith.mulf %300, %298 : vector<2x64xf32>
    %302 = arith.mulf %293, %250 : vector<2x64xf32>
    %303 = arith.addf %301, %302 : vector<2x64xf32>
    %304 = arith.truncf %303 : vector<2x64xf32> to vector<2x64xbf16>
    %cst_57 = arith.constant dense<0.000000e+00> : vector<2x192xf32>
    %305 = tpu.matmul %304, %7, %cst_57 {dimension_numbers = #tpu.dot_dimension_numbers<[1], [0], [0], [1], [0, 0, 1, 1], [], []>} : vector<2x64xbf16>, vector<64x192xbf16>, vector<2x192xf32> -> vector<2x192xf32>
    %306 = vector.broadcast %10 : vector<1x192xf32> to vector<2x192xf32>
    %307 = arith.addf %305, %306 : vector<2x192xf32>
    %308 = arith.truncf %278 : vector<2x64xf32> to vector<2x64xbf16>
    %cst_58 = arith.constant dense<0.000000e+00> : vector<2x192xf32>
    %309 = tpu.matmul %308, %8, %cst_58 {dimension_numbers = #tpu.dot_dimension_numbers<[1], [0], [0], [1], [0, 0, 1, 1], [], []>} : vector<2x64xbf16>, vector<64x192xbf16>, vector<2x192xf32> -> vector<2x192xf32>
    %310 = vector.broadcast %11 : vector<1x192xf32> to vector<2x192xf32>
    %311 = arith.addf %309, %310 : vector<2x192xf32>
    %312 = vector.extract_strided_slice %307 {offsets = [0, 0], sizes = [2, 128], strides = [1, 1]} : vector<2x192xf32> to vector<2x128xf32>
    %313 = vector.extract_strided_slice %311 {offsets = [0, 0], sizes = [2, 128], strides = [1, 1]} : vector<2x192xf32> to vector<2x128xf32>
    %314 = arith.addf %312, %313 : vector<2x128xf32>
    %315 = arith.negf %314 : vector<2x128xf32>
    %316 = math.exp %315 : vector<2x128xf32>
    %cst_59 = arith.constant 1.000000e+00 : f32
    %317 = vector.broadcast %cst_59 : f32 to vector<2x128xf32>
    %318 = arith.addf %317, %316 : vector<2x128xf32>
    %319 = arith.divf %317, %318 : vector<2x128xf32>
    %320 = vector.extract_strided_slice %319 {offsets = [0, 0], sizes = [2, 64], strides = [1, 1]} : vector<2x128xf32> to vector<2x64xf32>
    %321 = vector.extract_strided_slice %319 {offsets = [0, 64], sizes = [2, 64], strides = [1, 1]} : vector<2x128xf32> to vector<2x64xf32>
    %322 = vector.extract_strided_slice %307 {offsets = [0, 128], sizes = [2, 64], strides = [1, 1]} : vector<2x192xf32> to vector<2x64xf32>
    %323 = vector.extract_strided_slice %311 {offsets = [0, 128], sizes = [2, 64], strides = [1, 1]} : vector<2x192xf32> to vector<2x64xf32>
    %324 = arith.mulf %320, %323 : vector<2x64xf32>
    %325 = arith.addf %322, %324 : vector<2x64xf32>
    %326 = math.tanh %325 : vector<2x64xf32>
    %cst_60 = arith.constant 1.000000e+00 : f32
    %327 = vector.broadcast %cst_60 : f32 to vector<2x64xf32>
    %328 = arith.subf %327, %321 : vector<2x64xf32>
    %329 = arith.mulf %328, %326 : vector<2x64xf32>
    %330 = arith.mulf %321, %278 : vector<2x64xf32>
    %331 = arith.addf %329, %330 : vector<2x64xf32>
    %332 = vector.extract_strided_slice %5 {offsets = [12, 0], sizes = [2, 192], strides = [1, 1]} : vector<16x192xf32> to vector<2x192xf32>
    %333 = arith.truncf %303 : vector<2x64xf32> to vector<2x64xbf16>
    %cst_61 = arith.constant dense<0.000000e+00> : vector<2x192xf32>
    %334 = tpu.matmul %333, %6, %cst_61 {dimension_numbers = #tpu.dot_dimension_numbers<[1], [0], [0], [1], [0, 0, 1, 1], [], []>} : vector<2x64xbf16>, vector<64x192xbf16>, vector<2x192xf32> -> vector<2x192xf32>
    %335 = vector.broadcast %9 : vector<1x192xf32> to vector<2x192xf32>
    %336 = arith.addf %334, %335 : vector<2x192xf32>
    %337 = vector.extract_strided_slice %332 {offsets = [0, 0], sizes = [2, 128], strides = [1, 1]} : vector<2x192xf32> to vector<2x128xf32>
    %338 = vector.extract_strided_slice %336 {offsets = [0, 0], sizes = [2, 128], strides = [1, 1]} : vector<2x192xf32> to vector<2x128xf32>
    %339 = arith.addf %337, %338 : vector<2x128xf32>
    %340 = arith.negf %339 : vector<2x128xf32>
    %341 = math.exp %340 : vector<2x128xf32>
    %cst_62 = arith.constant 1.000000e+00 : f32
    %342 = vector.broadcast %cst_62 : f32 to vector<2x128xf32>
    %343 = arith.addf %342, %341 : vector<2x128xf32>
    %344 = arith.divf %342, %343 : vector<2x128xf32>
    %345 = vector.extract_strided_slice %344 {offsets = [0, 0], sizes = [2, 64], strides = [1, 1]} : vector<2x128xf32> to vector<2x64xf32>
    %346 = vector.extract_strided_slice %344 {offsets = [0, 64], sizes = [2, 64], strides = [1, 1]} : vector<2x128xf32> to vector<2x64xf32>
    %347 = vector.extract_strided_slice %332 {offsets = [0, 128], sizes = [2, 64], strides = [1, 1]} : vector<2x192xf32> to vector<2x64xf32>
    %348 = vector.extract_strided_slice %336 {offsets = [0, 128], sizes = [2, 64], strides = [1, 1]} : vector<2x192xf32> to vector<2x64xf32>
    %349 = arith.mulf %345, %348 : vector<2x64xf32>
    %350 = arith.addf %347, %349 : vector<2x64xf32>
    %351 = math.tanh %350 : vector<2x64xf32>
    %cst_63 = arith.constant 1.000000e+00 : f32
    %352 = vector.broadcast %cst_63 : f32 to vector<2x64xf32>
    %353 = arith.subf %352, %346 : vector<2x64xf32>
    %354 = arith.mulf %353, %351 : vector<2x64xf32>
    %355 = arith.mulf %346, %303 : vector<2x64xf32>
    %356 = arith.addf %354, %355 : vector<2x64xf32>
    %357 = arith.truncf %356 : vector<2x64xf32> to vector<2x64xbf16>
    %cst_64 = arith.constant dense<0.000000e+00> : vector<2x192xf32>
    %358 = tpu.matmul %357, %7, %cst_64 {dimension_numbers = #tpu.dot_dimension_numbers<[1], [0], [0], [1], [0, 0, 1, 1], [], []>} : vector<2x64xbf16>, vector<64x192xbf16>, vector<2x192xf32> -> vector<2x192xf32>
    %359 = vector.broadcast %10 : vector<1x192xf32> to vector<2x192xf32>
    %360 = arith.addf %358, %359 : vector<2x192xf32>
    %361 = arith.truncf %331 : vector<2x64xf32> to vector<2x64xbf16>
    %cst_65 = arith.constant dense<0.000000e+00> : vector<2x192xf32>
    %362 = tpu.matmul %361, %8, %cst_65 {dimension_numbers = #tpu.dot_dimension_numbers<[1], [0], [0], [1], [0, 0, 1, 1], [], []>} : vector<2x64xbf16>, vector<64x192xbf16>, vector<2x192xf32> -> vector<2x192xf32>
    %363 = vector.broadcast %11 : vector<1x192xf32> to vector<2x192xf32>
    %364 = arith.addf %362, %363 : vector<2x192xf32>
    %365 = vector.extract_strided_slice %360 {offsets = [0, 0], sizes = [2, 128], strides = [1, 1]} : vector<2x192xf32> to vector<2x128xf32>
    %366 = vector.extract_strided_slice %364 {offsets = [0, 0], sizes = [2, 128], strides = [1, 1]} : vector<2x192xf32> to vector<2x128xf32>
    %367 = arith.addf %365, %366 : vector<2x128xf32>
    %368 = arith.negf %367 : vector<2x128xf32>
    %369 = math.exp %368 : vector<2x128xf32>
    %cst_66 = arith.constant 1.000000e+00 : f32
    %370 = vector.broadcast %cst_66 : f32 to vector<2x128xf32>
    %371 = arith.addf %370, %369 : vector<2x128xf32>
    %372 = arith.divf %370, %371 : vector<2x128xf32>
    %373 = vector.extract_strided_slice %372 {offsets = [0, 0], sizes = [2, 64], strides = [1, 1]} : vector<2x128xf32> to vector<2x64xf32>
    %374 = vector.extract_strided_slice %372 {offsets = [0, 64], sizes = [2, 64], strides = [1, 1]} : vector<2x128xf32> to vector<2x64xf32>
    %375 = vector.extract_strided_slice %360 {offsets = [0, 128], sizes = [2, 64], strides = [1, 1]} : vector<2x192xf32> to vector<2x64xf32>
    %376 = vector.extract_strided_slice %364 {offsets = [0, 128], sizes = [2, 64], strides = [1, 1]} : vector<2x192xf32> to vector<2x64xf32>
    %377 = arith.mulf %373, %376 : vector<2x64xf32>
    %378 = arith.addf %375, %377 : vector<2x64xf32>
    %379 = math.tanh %378 : vector<2x64xf32>
    %cst_67 = arith.constant 1.000000e+00 : f32
    %380 = vector.broadcast %cst_67 : f32 to vector<2x64xf32>
    %381 = arith.subf %380, %374 : vector<2x64xf32>
    %382 = arith.mulf %381, %379 : vector<2x64xf32>
    %383 = arith.mulf %374, %331 : vector<2x64xf32>
    %384 = arith.addf %382, %383 : vector<2x64xf32>
    %385 = vector.extract_strided_slice %5 {offsets = [14, 0], sizes = [2, 192], strides = [1, 1]} : vector<16x192xf32> to vector<2x192xf32>
    %386 = arith.truncf %356 : vector<2x64xf32> to vector<2x64xbf16>
    %cst_68 = arith.constant dense<0.000000e+00> : vector<2x192xf32>
    %387 = tpu.matmul %386, %6, %cst_68 {dimension_numbers = #tpu.dot_dimension_numbers<[1], [0], [0], [1], [0, 0, 1, 1], [], []>} : vector<2x64xbf16>, vector<64x192xbf16>, vector<2x192xf32> -> vector<2x192xf32>
    %388 = vector.broadcast %9 : vector<1x192xf32> to vector<2x192xf32>
    %389 = arith.addf %387, %388 : vector<2x192xf32>
    %390 = vector.extract_strided_slice %385 {offsets = [0, 0], sizes = [2, 128], strides = [1, 1]} : vector<2x192xf32> to vector<2x128xf32>
    %391 = vector.extract_strided_slice %389 {offsets = [0, 0], sizes = [2, 128], strides = [1, 1]} : vector<2x192xf32> to vector<2x128xf32>
    %392 = arith.addf %390, %391 : vector<2x128xf32>
    %393 = arith.negf %392 : vector<2x128xf32>
    %394 = math.exp %393 : vector<2x128xf32>
    %cst_69 = arith.constant 1.000000e+00 : f32
    %395 = vector.broadcast %cst_69 : f32 to vector<2x128xf32>
    %396 = arith.addf %395, %394 : vector<2x128xf32>
    %397 = arith.divf %395, %396 : vector<2x128xf32>
    %398 = vector.extract_strided_slice %397 {offsets = [0, 0], sizes = [2, 64], strides = [1, 1]} : vector<2x128xf32> to vector<2x64xf32>
    %399 = vector.extract_strided_slice %397 {offsets = [0, 64], sizes = [2, 64], strides = [1, 1]} : vector<2x128xf32> to vector<2x64xf32>
    %400 = vector.extract_strided_slice %385 {offsets = [0, 128], sizes = [2, 64], strides = [1, 1]} : vector<2x192xf32> to vector<2x64xf32>
    %401 = vector.extract_strided_slice %389 {offsets = [0, 128], sizes = [2, 64], strides = [1, 1]} : vector<2x192xf32> to vector<2x64xf32>
    %402 = arith.mulf %398, %401 : vector<2x64xf32>
    %403 = arith.addf %400, %402 : vector<2x64xf32>
    %404 = math.tanh %403 : vector<2x64xf32>
    %cst_70 = arith.constant 1.000000e+00 : f32
    %405 = vector.broadcast %cst_70 : f32 to vector<2x64xf32>
    %406 = arith.subf %405, %399 : vector<2x64xf32>
    %407 = arith.mulf %406, %404 : vector<2x64xf32>
    %408 = arith.mulf %399, %356 : vector<2x64xf32>
    %409 = arith.addf %407, %408 : vector<2x64xf32>
    %410 = arith.truncf %409 : vector<2x64xf32> to vector<2x64xbf16>
    %cst_71 = arith.constant dense<0.000000e+00> : vector<2x192xf32>
    %411 = tpu.matmul %410, %7, %cst_71 {dimension_numbers = #tpu.dot_dimension_numbers<[1], [0], [0], [1], [0, 0, 1, 1], [], []>} : vector<2x64xbf16>, vector<64x192xbf16>, vector<2x192xf32> -> vector<2x192xf32>
    %412 = vector.broadcast %10 : vector<1x192xf32> to vector<2x192xf32>
    %413 = arith.addf %411, %412 : vector<2x192xf32>
    %414 = arith.truncf %384 : vector<2x64xf32> to vector<2x64xbf16>
    %cst_72 = arith.constant dense<0.000000e+00> : vector<2x192xf32>
    %415 = tpu.matmul %414, %8, %cst_72 {dimension_numbers = #tpu.dot_dimension_numbers<[1], [0], [0], [1], [0, 0, 1, 1], [], []>} : vector<2x64xbf16>, vector<64x192xbf16>, vector<2x192xf32> -> vector<2x192xf32>
    %416 = vector.broadcast %11 : vector<1x192xf32> to vector<2x192xf32>
    %417 = arith.addf %415, %416 : vector<2x192xf32>
    %418 = vector.extract_strided_slice %413 {offsets = [0, 0], sizes = [2, 128], strides = [1, 1]} : vector<2x192xf32> to vector<2x128xf32>
    %419 = vector.extract_strided_slice %417 {offsets = [0, 0], sizes = [2, 128], strides = [1, 1]} : vector<2x192xf32> to vector<2x128xf32>
    %420 = arith.addf %418, %419 : vector<2x128xf32>
    %421 = arith.negf %420 : vector<2x128xf32>
    %422 = math.exp %421 : vector<2x128xf32>
    %cst_73 = arith.constant 1.000000e+00 : f32
    %423 = vector.broadcast %cst_73 : f32 to vector<2x128xf32>
    %424 = arith.addf %423, %422 : vector<2x128xf32>
    %425 = arith.divf %423, %424 : vector<2x128xf32>
    %426 = vector.extract_strided_slice %425 {offsets = [0, 0], sizes = [2, 64], strides = [1, 1]} : vector<2x128xf32> to vector<2x64xf32>
    %427 = vector.extract_strided_slice %425 {offsets = [0, 64], sizes = [2, 64], strides = [1, 1]} : vector<2x128xf32> to vector<2x64xf32>
    %428 = vector.extract_strided_slice %413 {offsets = [0, 128], sizes = [2, 64], strides = [1, 1]} : vector<2x192xf32> to vector<2x64xf32>
    %429 = vector.extract_strided_slice %417 {offsets = [0, 128], sizes = [2, 64], strides = [1, 1]} : vector<2x192xf32> to vector<2x64xf32>
    %430 = arith.mulf %426, %429 : vector<2x64xf32>
    %431 = arith.addf %428, %430 : vector<2x64xf32>
    %432 = math.tanh %431 : vector<2x64xf32>
    %cst_74 = arith.constant 1.000000e+00 : f32
    %433 = vector.broadcast %cst_74 : f32 to vector<2x64xf32>
    %434 = arith.subf %433, %427 : vector<2x64xf32>
    %435 = arith.mulf %434, %432 : vector<2x64xf32>
    %436 = arith.mulf %427, %384 : vector<2x64xf32>
    %437 = arith.addf %435, %436 : vector<2x64xf32>
    %c0_75 = arith.constant 0 : index
    %c0_76 = arith.constant 0 : index
    %438 = vector.load %arg9[%c0_75, %c0_76] : memref<64x128xf32, #tpu.memory_space<vmem>>, vector<64x128xf32>
    %cst_77 = arith.constant dense<0.000000e+00> : vector<2x128xf32>
    %439 = tpu.matmul %437, %438, %cst_77 {dimension_numbers = #tpu.dot_dimension_numbers<[1], [0], [0], [1], [0, 0, 1, 1], [], []>} : vector<2x64xf32>, vector<64x128xf32>, vector<2x128xf32> -> vector<2x128xf32>
    %c0_78 = arith.constant 0 : index
    %c0_79 = arith.constant 0 : index
    %440 = vector.load %arg10[%c0_78, %c0_79] : memref<1x128xf32, #tpu.memory_space<vmem>>, vector<1x128xf32>
    %441 = vector.broadcast %440 : vector<1x128xf32> to vector<2x128xf32>
    %442 = arith.addf %439, %441 : vector<2x128xf32>
    %c0_80 = arith.constant 0 : index
    %c0_81 = arith.constant 0 : index
    %443 = vector.load %arg11[%c0_80, %c0_81] : memref<2x128xf32, #tpu.memory_space<vmem>>, vector<2x128xf32>
    tpu.vector_store %arg11[%c0_80, %c0_81], %442 {strides = array<i32>} : memref<2x128xf32, #tpu.memory_space<vmem>>, vector<2x128xf32>,
    return
  }
}

</mosaic_0001>

<llo_original>
// kernel: gcn_gru_forward.1
$region0: #{gcn_gru_forward.1}
  #allocation0 [shape = 'u32[]', space=smem, size = 0x4, offset = 0x4, fixed_abs, tag = 'smem constant byte address 0x4 - core index']
  #allocation1 [shape = 'u32[144,128]{1,0:T(1,128)}', space=vmem, size = 0x12000, scoped, tag = 'internal scratch']
  %s0 = inlined_call_operand.vmem [shape: f32[16,16], index: 0, kind: input, shape index: {}]
  %s1 = inlined_call_operand.vmem [shape: f32[16,192], index: 1, kind: input, shape index: {}]
  %s2 = inlined_call_operand.vmem [shape: f32[1,192], index: 2, kind: input, shape index: {}]
  %s3 = inlined_call_operand.vmem [shape: bf16[64,192], index: 3, kind: input, shape index: {}]
  %s4 = inlined_call_operand.vmem [shape: f32[1,192], index: 4, kind: input, shape index: {}]
  %s5 = inlined_call_operand.vmem [shape: bf16[64,192], index: 5, kind: input, shape index: {}]
  %s6 = inlined_call_operand.vmem [shape: f32[1,192], index: 6, kind: input, shape index: {}]
  %s7 = inlined_call_operand.vmem [shape: bf16[64,192], index: 7, kind: input, shape index: {}]
  %s8 = inlined_call_operand.vmem [shape: f32[1,192], index: 8, kind: input, shape index: {}]
  %s9 = inlined_call_operand.vmem [shape: f32[64,128], index: 9, kind: input, shape index: {}]
  %s10 = inlined_call_operand.vmem [shape: f32[1,128], index: 10, kind: input, shape index: {}]
  %s11 = inlined_call_operand.hbm [shape: f32[2,128], index: 11, kind: output, shape index: {}]
  %s12 = sld [smem:[#allocation0]]
  $region54: #{gcn_gru_forward.1} parent=0
    _
  %s14 = ssub.s32 1, %s12
  %s15 = scalar_select 0, %s14, %s12
  $region1: #{gcn_gru_forward.1} parent=0
    #allocation2 [shape = 'u8[1024]{0}', space=vmem, size = 0x400, scoped, tag = 'output window, operand 0, single buffered']
    #allocation3 [shape = 's32[1]{0}', space=sflag, size = 0x4, scoped, tag = 'scoped memory for gcn_gru_forward.1']
    %16 = vsyncpa [#allocation3], 0
    // Predicated region
    $region2: #{gcn_gru_forward.1} parent=1 // pred_check
      _
    $region3: #{gcn_gru_forward.1} parent=1 // pred_check_branch
      %18 = sbr.rel (0) target = $region5
    $region4: #{gcn_gru_forward.1} parent=1 // pred_region
      _
    $region5: #{gcn_gru_forward.1} parent=1 // pred_fallthru
      _
    // Predicated region
    $region6: #{gcn_gru_forward.1} parent=1 // pred_check
      _
    $region7: #{gcn_gru_forward.1} parent=1 // pred_check_branch
      %20 = sbr.rel (0) target = $region9
    $region8: #{gcn_gru_forward.1} parent=1 // pred_region
      _
    $region9: #{gcn_gru_forward.1} parent=1 // pred_fallthru
      _
    // Predicated region
    $region10: #{gcn_gru_forward.1} parent=1 // pred_check
      _
    $region11: #{gcn_gru_forward.1} parent=1 // pred_check_branch
      %22 = sbr.rel (0) target = $region13
    $region12: #{gcn_gru_forward.1} parent=1 // pred_region
      _
    $region13: #{gcn_gru_forward.1} parent=1 // pred_fallthru
      _
    // Predicated region
    $region14: #{gcn_gru_forward.1} parent=1 // pred_check
      _
    $region15: #{gcn_gru_forward.1} parent=1 // pred_check_branch
      %24 = sbr.rel (0) target = $region17
    $region16: #{gcn_gru_forward.1} parent=1 // pred_region
      _
    $region17: #{gcn_gru_forward.1} parent=1 // pred_fallthru
      _
    // Predicated region
    $region18: #{gcn_gru_forward.1} parent=1 // pred_check
      _
    $region19: #{gcn_gru_forward.1} parent=1 // pred_check_branch
      %26 = sbr.rel (0) target = $region21
    $region20: #{gcn_gru_forward.1} parent=1 // pred_region
      _
    $region21: #{gcn_gru_forward.1} parent=1 // pred_fallthru
      _
    // Predicated region
    $region22: #{gcn_gru_forward.1} parent=1 // pred_check
      _
    $region23: #{gcn_gru_forward.1} parent=1 // pred_check_branch
      %28 = sbr.rel (0) target = $region25
    $region24: #{gcn_gru_forward.1} parent=1 // pred_region
      _
    $region25: #{gcn_gru_forward.1} parent=1 // pred_fallthru
      _
    // Predicated region
    $region26: #{gcn_gru_forward.1} parent=1 // pred_check
      _
    $region27: #{gcn_gru_forward.1} parent=1 // pred_check_branch
      %30 = sbr.rel (0) target = $region29
    $region28: #{gcn_gru_forward.1} parent=1 // pred_region
      _
    $region29: #{gcn_gru_forward.1} parent=1 // pred_fallthru
      _
    // Predicated region
    $region30: #{gcn_gru_forward.1} parent=1 // pred_check
      _
    $region31: #{gcn_gru_forward.1} parent=1 // pred_check_branch
      %32 = sbr.rel (0) target = $region33
    $region32: #{gcn_gru_forward.1} parent=1 // pred_region
      _
    $region33: #{gcn_gru_forward.1} parent=1 // pred_fallthru
      _
    // Predicated region
    $region34: #{gcn_gru_forward.1} parent=1 // pred_check
      _
    $region35: #{gcn_gru_forward.1} parent=1 // pred_check_branch
      %34 = sbr.rel (0) target = $region37
    $region36: #{gcn_gru_forward.1} parent=1 // pred_region
      _
    $region37: #{gcn_gru_forward.1} parent=1 // pred_fallthru
      _
    // Predicated region
    $region38: #{gcn_gru_forward.1} parent=1 // pred_check
      _
    $region39: #{gcn_gru_forward.1} parent=1 // pred_check_branch
      %36 = sbr.rel (0) target = $region41
    $region40: #{gcn_gru_forward.1} parent=1 // pred_region
      _
    $region41: #{gcn_gru_forward.1} parent=1 // pred_fallthru
      _
    // Predicated region
    $region42: #{gcn_gru_forward.1} parent=1 // pred_check
      _
    $region43: #{gcn_gru_forward.1} parent=1 // pred_check_branch
      %38 = sbr.rel (0) target = $region45
    $region44: #{gcn_gru_forward.1} parent=1 // pred_region
      _
    $region45: #{gcn_gru_forward.1} parent=1 // pred_fallthru
      _
    %v40 = vld [vmem:[%s0] sm:$0xff]
    %v41 = vld [vmem:[%s0 + $0x8] sm:$0xff]
    %v42 = vld [vmem:[%s1] sm:$0xff]
    %v43 = vld [vmem:[%s1 + $0x8] sm:$0xff]
    %v44 = vld [vmem:[%s1 + $0x10] sm:$0xff]
    %v45 = vld [vmem:[%s1 + $0x18] sm:$0xff]
    %v46 = vld [vmem:[%s2] sm:$0x3]
    %v48 = vlaneseq
    %v49 = vshrl.u32 %v48, 7
    %v50 = vsub.s32 0, %v49
    %v51 = vrot.slane %v46, %v50
    %v52 = vlaneseq
    %v53 = vshrl.u32 %v52, 7
    %v54 = vsub.s32 1, %v53
    %v55 = vrot.slane %v46, %v54
    %vm58 = vcmask 130048
    %v60 = vsel %vm58, %v40, 0
    %v63 = vsel %vm58, %v41, 0
    %65 = vmatprep.subr.mxu0 %v43
    %66 = vmatpush1.msra.mxu0 %v42
    %67 = vmatprep.subr.mxu0 %v45
    %68 = vmatpush1.msra.mxu0 %v44
    %69 = vmatprep.subr.mxu0 0.0
    %70 = vmatpush1.msra.mxu0 0.0
    %71 = vmatprep.subr.mxu0 0.0
    %72 = vmatpush1.msra.mxu0 0.0
    %73 = vmatprep.subr.mxu0 0.0
    %74 = vmatpush1.msra.mxu0 0.0
    %75 = vmatprep.subr.mxu0 0.0
    %76 = vmatpush1.msra.mxu0 0.0
    %77 = vmatprep.subr.mxu0 0.0
    %78 = vmatpush1.msra.mxu0 0.0
    %79 = vmatprep.subr.mxu0 0.0
    %80 = vmatpush1.msra.mxu0 0.0
    %81 = vmatprep.subr.mxu0 0.0
    %82 = vmatpush1.msra.mxu0 0.0
    %83 = vmatprep.subr.mxu0 0.0
    %84 = vmatpush1.msra.mxu0 0.0
    %85 = vmatprep.subr.mxu0 0.0
    %86 = vmatpush1.msra.mxu0 0.0
    %87 = vmatprep.subr.mxu0 0.0
    %88 = vmatpush1.msra.mxu0 0.0
    %89 = vmatprep.subr.mxu0 0.0
    %90 = vmatpush1.msra.mxu0 0.0
    %91 = vmatprep.subr.mxu0 0.0
    %92 = vmatpush1.msra.mxu0 0.0
    %93 = vmatprep.subr.mxu0 0.0
    %94 = vmatpush1.msra.mxu0 0.0
    %95 = vmatprep.subr.mxu0 0.0
    %96 = vmatpush1.msra.mxu0 0.0
    %97 = vmatprep.subr.mxu0 0.0
    %98 = vmatpush1.msra.mxu0 0.0
    %99 = vmatprep.subr.mxu0 0.0
    %100 = vmatpush1.msra.mxu0 0.0
    %101 = vmatprep.subr.mxu0 0.0
    %102 = vmatpush1.msra.mxu0 0.0
    %103 = vmatprep.subr.mxu0 0.0
    %104 = vmatpush1.msra.mxu0 0.0
    %105 = vmatprep.subr.mxu0 0.0
    %106 = vmatpush1.msra.mxu0 0.0
    %107 = vmatprep.subr.mxu0 0.0
    %108 = vmatpush1.msra.mxu0 0.0
    %109 = vmatprep.subr.mxu0 0.0
    %110 = vmatpush1.msra.mxu0 0.0
    %111 = vmatprep.subr.mxu0 0.0
    %112 = vmatpush1.msra.mxu0 0.0
    %113 = vmatprep.subr.mxu0 0.0
    %114 = vmatpush1.msra.mxu0 0.0
    %115 = vmatprep.subr.mxu0 0.0
    %116 = vmatpush1.msra.mxu0 0.0
    %117 = vmatprep.subr.mxu0 0.0
    %118 = vmatpush1.msra.mxu0 0.0
    %119 = vmatprep.subr.mxu0 0.0
    %120 = vmatpush1.msra.mxu0 0.0
    %121 = vmatprep.subr.mxu0 0.0
    %122 = vmatpush1.msra.mxu0 0.0
    %123 = vmatprep.subr.mxu0 0.0
    %124 = vmatpush1.msra.mxu0 0.0
    %125 = vmatprep.subr.mxu0 0.0
    %126 = vmatpush1.msra.mxu0 0.0
    %127 = vmatprep.subr.mxu0 0.0
    %128 = vmatpush1.msra.mxu0 0.0
    %129 = vmatprep.mubr.f32.mxu0 0.0
    %130 = vmatmul.mubr.f32.gmra.mrb[0].mxu0 %v60
    %v131 = vpop.f32.mrb[0].mxu0
    %v132 = vadd.f32 %v51, %v131
    %v133 = vpop.f32.mrb[0].mxu0
    %v134 = vadd.f32 %v55, %v133
    %135 = vmatprep.mubr.f32.mxu0 0.0
    %136 = vmatmul.mubr.f32.gmra.mrb[0].mxu0 %v63
    %v137 = vpop.f32.mrb[0].mxu0
    %v138 = vadd.f32 %v51, %v137
    %v139 = vpop.f32.mrb[0].mxu0
    %v140 = vadd.f32 %v55, %v139
    %141 = vdwg.mxu0
    %v142 = vld [vmem:[%s3] sm:$0xff]
    %v143 = vld [vmem:[%s3 + $0x8] sm:$0xff]
    %v144 = vld [vmem:[%s3 + $0x10] sm:$0xff]
    %v145 = vld [vmem:[%s3 + $0x18] sm:$0xff]
    %v146 = vld [vmem:[%s3 + $0x20] sm:$0xff]
    %v147 = vld [vmem:[%s3 + $0x28] sm:$0xff]
    %v148 = vld [vmem:[%s3 + $0x30] sm:$0xff]
    %v149 = vld [vmem:[%s3 + $0x38] sm:$0xff]
    %v150 = vld [vmem:[%s5] sm:$0xff]
    %v151 = vld [vmem:[%s5 + $0x8] sm:$0xff]
    %v152 = vld [vmem:[%s5 + $0x10] sm:$0xff]
    %v153 = vld [vmem:[%s5 + $0x18] sm:$0xff]
    %v154 = vld [vmem:[%s5 + $0x20] sm:$0xff]
    %v155 = vld [vmem:[%s5 + $0x28] sm:$0xff]
    %v156 = vld [vmem:[%s5 + $0x30] sm:$0xff]
    %v157 = vld [vmem:[%s5 + $0x38] sm:$0xff]
    %v158 = vld [vmem:[%s7] sm:$0xff]
    %v159 = vld [vmem:[%s7 + $0x8] sm:$0xff]
    %v160 = vld [vmem:[%s7 + $0x10] sm:$0xff]
    %v161 = vld [vmem:[%s7 + $0x18] sm:$0xff]
    %v162 = vld [vmem:[%s7 + $0x20] sm:$0xff]
    %v163 = vld [vmem:[%s7 + $0x28] sm:$0xff]
    %v164 = vld [vmem:[%s7 + $0x30] sm:$0xff]
    %v165 = vld [vmem:[%s7 + $0x38] sm:$0xff]
    %v166 = vld [vmem:[%s4] sm:$0x3]
    %v167 = vld [vmem:[%s6] sm:$0x3]
    %v168 = vld [vmem:[%s8] sm:$0x3]
    %v170 = vlaneseq
    %v171 = vshrl.u32 %v170, 7
    %v172 = vsub.s32 0, %v171
    %v173 = vrot.slane %v166, %v172
    %v174 = vlaneseq
    %v175 = vshrl.u32 %v174, 7
    %v176 = vsub.s32 1, %v175
    %v177 = vrot.slane %v166, %v176
    %v188 = vunpack.c.l.b16 %v142
    %v189 = vunpack.c.h.b16 %v142
    %v190 = vunpack.c.l.b16 %v143
    %v191 = vunpack.c.h.b16 %v143
    %v192 = vunpack.c.l.b16 %v144
    %v193 = vunpack.c.h.b16 %v144
    %v194 = vunpack.c.l.b16 %v145
    %v195 = vunpack.c.h.b16 %v145
    %v196 = vunpack.c.l.b16 %v146
    %v197 = vunpack.c.h.b16 %v146
    %v198 = vunpack.c.l.b16 %v147
    %v199 = vunpack.c.h.b16 %v147
    %v200 = vunpack.c.l.b16 %v148
    %v201 = vunpack.c.h.b16 %v148
    %v202 = vunpack.c.l.b16 %v149
    %v203 = vunpack.c.h.b16 %v149
    %v204 = vpack.c.b16 %v190, %v188
    %v205 = vpack.c.b16 %v191, %v189
    %v206 = vpack.c.b16 %v194, %v192
    %v207 = vpack.c.b16 %v195, %v193
    %v208 = vpack.c.b16 %v198, %v196
    %v209 = vpack.c.b16 %v199, %v197
    %v210 = vpack.c.b16 %v202, %v200
    %v211 = vpack.c.b16 %v203, %v201
    %vm220 = vcmask 523264
    %v222 = vsel %vm220, 0, 0
    %224 = vmatprep.subr.bf16.mxu0 %v205
    %225 = vmatpush1.bf16.msra.mxu0 %v204
    %226 = vmatprep.subr.bf16.mxu0 %v207
    %227 = vmatpush1.bf16.msra.mxu0 %v206
    %228 = vmatprep.subr.bf16.mxu0 %v209
    %229 = vmatpush1.bf16.msra.mxu0 %v208
    %230 = vmatprep.subr.bf16.mxu0 %v211
    %231 = vmatpush1.bf16.msra.mxu0 %v210
    %232 = vmatprep.subr.bf16.mxu0 0
    %233 = vmatpush1.bf16.msra.mxu0 0
    %234 = vmatprep.subr.bf16.mxu0 0
    %235 = vmatpush1.bf16.msra.mxu0 0
    %236 = vmatprep.subr.bf16.mxu0 0
    %237 = vmatpush1.bf16.msra.mxu0 0
    %238 = vmatprep.subr.bf16.mxu0 0
    %239 = vmatpush1.bf16.msra.mxu0 0
    %240 = vmatprep.subr.bf16.mxu0 0
    %241 = vmatpush1.bf16.msra.mxu0 0
    %242 = vmatprep.subr.bf16.mxu0 0
    %243 = vmatpush1.bf16.msra.mxu0 0
    %244 = vmatprep.subr.bf16.mxu0 0
    %245 = vmatpush1.bf16.msra.mxu0 0
    %246 = vmatprep.subr.bf16.mxu0 0
    %247 = vmatpush1.bf16.msra.mxu0 0
    %248 = vmatprep.subr.bf16.mxu0 0
    %249 = vmatpush1.bf16.msra.mxu0 0
    %250 = vmatprep.subr.bf16.mxu0 0
    %251 = vmatpush1.bf16.msra.mxu0 0
    %252 = vmatprep.subr.bf16.mxu0 0
    %253 = vmatpush1.bf16.msra.mxu0 0
    %254 = vmatprep.subr.bf16.mxu0 0
    %255 = vmatpush1.bf16.msra.mxu0 0
    %256 = vmatprep.mubr.bf16.mxu0 0
    %257 = vmatmul.mubr.bf16.gmra.mrb[0].mxu0 %v222
    %v258 = vpop.f32.mrb[0].mxu0
    %v259 = vadd.f32 %v173, %v258
    %v260 = vpop.f32.mrb[0].mxu0
    %v261 = vadd.f32 %v177, %v260
    %v262 = vpop.f32.mrb[0].mxu0
    %v263 = vpop.f32.mrb[0].mxu0
    %264 = vdwg.mxu0
    %v265 = vadd.f32 %v132, %v259
    %v266 = vxor.u32 %v265, 2147483648
    %v267 = vmul.f32 %v266, 1.442695
    %v268 = vpow.pop %v267
    %v269 = vadd.f32 %v268, 1.0
    %v270 = vrcp.pop %v269
    %v271 = vmul.f32 1.0, %v270
    %v272 = vmul.f32 %v271, %v261
    %v273 = vadd.f32 %v134, %v272
    %v274 = vtanh.pop %v273
    %v275 = vsub.f32 1.0, %v271
    %277 = vrot.lane.b32.xlu0 %v274, 64
    %v278 = vpop.permute.xlu0 %277
    %v280 = vmul.f32 %v275, %v278
    %v281 = vmul.f32 %v271, 0.0
    %v282 = vadd.f32 %v280, %v281
    %v283 = vpack.c.bf16 %v282, %v282
    %v285 = vlaneseq
    %v286 = vshrl.u32 %v285, 7
    %v287 = vsub.s32 0, %v286
    %v288 = vrot.slane %v167, %v287
    %v289 = vlaneseq
    %v290 = vshrl.u32 %v289, 7
    %v291 = vsub.s32 1, %v290
    %v292 = vrot.slane %v167, %v291
    %296 = vrot.lane.b32.xlu0 %v283, 64
    %v297 = vpop.permute.xlu0 %296
    %v306 = vunpack.c.l.b16 %v150
    %v307 = vunpack.c.h.b16 %v150
    %v308 = vunpack.c.l.b16 %v151
    %v309 = vunpack.c.h.b16 %v151
    %v310 = vunpack.c.l.b16 %v152
    %v311 = vunpack.c.h.b16 %v152
    %v312 = vunpack.c.l.b16 %v153
    %v313 = vunpack.c.h.b16 %v153
    %v314 = vunpack.c.l.b16 %v154
    %v315 = vunpack.c.h.b16 %v154
    %v316 = vunpack.c.l.b16 %v155
    %v317 = vunpack.c.h.b16 %v155
    %v318 = vunpack.c.l.b16 %v156
    %v319 = vunpack.c.h.b16 %v156
    %v320 = vunpack.c.l.b16 %v157
    %v321 = vunpack.c.h.b16 %v157
    %v322 = vpack.c.b16 %v308, %v306
    %v323 = vpack.c.b16 %v309, %v307
    %v324 = vpack.c.b16 %v312, %v310
    %v325 = vpack.c.b16 %v313, %v311
    %v326 = vpack.c.b16 %v316, %v314
    %v327 = vpack.c.b16 %v317, %v315
    %v328 = vpack.c.b16 %v320, %v318
    %v329 = vpack.c.b16 %v321, %v319
    %v339 = vsel %vm220, %v297, 0
    %341 = vmatprep.subr.bf16.mxu0 %v323
    %342 = vmatpush1.bf16.msra.mxu0 %v322
    %343 = vmatprep.subr.bf16.mxu0 %v325
    %344 = vmatpush1.bf16.msra.mxu0 %v324
    %345 = vmatprep.subr.bf16.mxu0 %v327
    %346 = vmatpush1.bf16.msra.mxu0 %v326
    %347 = vmatprep.subr.bf16.mxu0 %v329
    %348 = vmatpush1.bf16.msra.mxu0 %v328
    %349 = vmatprep.subr.bf16.mxu0 0
    %350 = vmatpush1.bf16.msra.mxu0 0
    %351 = vmatprep.subr.bf16.mxu0 0
    %352 = vmatpush1.bf16.msra.mxu0 0
    %353 = vmatprep.subr.bf16.mxu0 0
    %354 = vmatpush1.bf16.msra.mxu0 0
    %355 = vmatprep.subr.bf16.mxu0 0
    %356 = vmatpush1.bf16.msra.mxu0 0
    %357 = vmatprep.subr.bf16.mxu0 0
    %358 = vmatpush1.bf16.msra.mxu0 0
    %359 = vmatprep.subr.bf16.mxu0 0
    %360 = vmatpush1.bf16.msra.mxu0 0
    %361 = vmatprep.subr.bf16.mxu0 0
    %362 = vmatpush1.bf16.msra.mxu0 0
    %363 = vmatprep.subr.bf16.mxu0 0
    %364 = vmatpush1.bf16.msra.mxu0 0
    %365 = vmatprep.subr.bf16.mxu0 0
    %366 = vmatpush1.bf16.msra.mxu0 0
    %367 = vmatprep.subr.bf16.mxu0 0
    %368 = vmatpush1.bf16.msra.mxu0 0
    %369 = vmatprep.subr.bf16.mxu0 0
    %370 = vmatpush1.bf16.msra.mxu0 0
    %371 = vmatprep.subr.bf16.mxu0 0
    %372 = vmatpush1.bf16.msra.mxu0 0
    %373 = vmatprep.mubr.bf16.mxu0 0
    %374 = vmatmul.mubr.bf16.gmra.mrb[0].mxu0 %v339
    %v375 = vpop.f32.mrb[0].mxu0
    %v376 = vadd.f32 %v288, %v375
    %v377 = vpop.f32.mrb[0].mxu0
    %v378 = vadd.f32 %v292, %v377
    %v379 = vpop.f32.mrb[0].mxu0
    %v380 = vpop.f32.mrb[0].mxu0
    %381 = vdwg.mxu0
    %v383 = vlaneseq
    %v384 = vshrl.u32 %v383, 7
    %v385 = vsub.s32 0, %v384
    %v386 = vrot.slane %v168, %v385
    %v387 = vlaneseq
    %v388 = vshrl.u32 %v387, 7
    %v389 = vsub.s32 1, %v388
    %v390 = vrot.slane %v168, %v389
    %v401 = vunpack.c.l.b16 %v158
    %v402 = vunpack.c.h.b16 %v158
    %v403 = vunpack.c.l.b16 %v159
    %v404 = vunpack.c.h.b16 %v159
    %v405 = vunpack.c.l.b16 %v160
    %v406 = vunpack.c.h.b16 %v160
    %v407 = vunpack.c.l.b16 %v161
    %v408 = vunpack.c.h.b16 %v161
    %v409 = vunpack.c.l.b16 %v162
    %v410 = vunpack.c.h.b16 %v162
    %v411 = vunpack.c.l.b16 %v163
    %v412 = vunpack.c.h.b16 %v163
    %v413 = vunpack.c.l.b16 %v164
    %v414 = vunpack.c.h.b16 %v164
    %v415 = vunpack.c.l.b16 %v165
    %v416 = vunpack.c.h.b16 %v165
    %v417 = vpack.c.b16 %v403, %v401
    %v418 = vpack.c.b16 %v404, %v402
    %v419 = vpack.c.b16 %v407, %v405
    %v420 = vpack.c.b16 %v408, %v406
    %v421 = vpack.c.b16 %v411, %v409
    %v422 = vpack.c.b16 %v412, %v410
    %v423 = vpack.c.b16 %v415, %v413
    %v424 = vpack.c.b16 %v416, %v414
    %433 = vmatprep.subr.bf16.mxu0 %v418
    %434 = vmatpush1.bf16.msra.mxu0 %v417
    %435 = vmatprep.subr.bf16.mxu0 %v420
    %436 = vmatpush1.bf16.msra.mxu0 %v419
    %437 = vmatprep.subr.bf16.mxu0 %v422
    %438 = vmatpush1.bf16.msra.mxu0 %v421
    %439 = vmatprep.subr.bf16.mxu0 %v424
    %440 = vmatpush1.bf16.msra.mxu0 %v423
    %441 = vmatprep.subr.bf16.mxu0 0
    %442 = vmatpush1.bf16.msra.mxu0 0
    %443 = vmatprep.subr.bf16.mxu0 0
    %444 = vmatpush1.bf16.msra.mxu0 0
    %445 = vmatprep.subr.bf16.mxu0 0
    %446 = vmatpush1.bf16.msra.mxu0 0
    %447 = vmatprep.subr.bf16.mxu0 0
    %448 = vmatpush1.bf16.msra.mxu0 0
    %449 = vmatprep.subr.bf16.mxu0 0
    %450 = vmatpush1.bf16.msra.mxu0 0
    %451 = vmatprep.subr.bf16.mxu0 0
    %452 = vmatpush1.bf16.msra.mxu0 0
    %453 = vmatprep.subr.bf16.mxu0 0
    %454 = vmatpush1.bf16.msra.mxu0 0
    %455 = vmatprep.subr.bf16.mxu0 0
    %456 = vmatpush1.bf16.msra.mxu0 0
    %457 = vmatprep.subr.bf16.mxu0 0
    %458 = vmatpush1.bf16.msra.mxu0 0
    %459 = vmatprep.subr.bf16.mxu0 0
    %460 = vmatpush1.bf16.msra.mxu0 0
    %461 = vmatprep.subr.bf16.mxu0 0
    %462 = vmatpush1.bf16.msra.mxu0 0
    %463 = vmatprep.subr.bf16.mxu0 0
    %464 = vmatpush1.bf16.msra.mxu0 0
    %465 = vmatprep.mubr.bf16.mxu0 0
    %466 = vmatmul.mubr.bf16.gmra.mrb[0].mxu0 %v222
    %v467 = vpop.f32.mrb[0].mxu0
    %v468 = vadd.f32 %v386, %v467
    %v469 = vpop.f32.mrb[0].mxu0
    %v470 = vadd.f32 %v390, %v469
    %v471 = vpop.f32.mrb[0].mxu0
    %v472 = vpop.f32.mrb[0].mxu0
    %473 = vdwg.mxu0
    %v474 = vadd.f32 %v376, %v468
    %v475 = vxor.u32 %v474, 2147483648
    %v476 = vmul.f32 %v475, 1.442695
    %v477 = vpow.pop %v476
    %v478 = vadd.f32 %v477, 1.0
    %v479 = vrcp.pop %v478
    %v480 = vmul.f32 1.0, %v479
    %v481 = vmul.f32 %v480, %v470
    %v482 = vadd.f32 %v378, %v481
    %v483 = vtanh.pop %v482
    %v484 = vsub.f32 1.0, %v480
    %486 = vrot.lane.b32.xlu0 %v483, 64
    %v487 = vpop.permute.xlu0 %486
    %v489 = vmul.f32 %v484, %v487
    %v490 = vmul.f32 %v480, 0.0
    %v491 = vadd.f32 %v489, %v490
    %492 = vmatprep.subr.bf16.mxu0 %v205
    %493 = vmatpush1.bf16.msra.mxu0 %v204
    %494 = vmatprep.subr.bf16.mxu0 %v207
    %495 = vmatpush1.bf16.msra.mxu0 %v206
    %496 = vmatprep.subr.bf16.mxu0 %v209
    %497 = vmatpush1.bf16.msra.mxu0 %v208
    %498 = vmatprep.subr.bf16.mxu0 %v211
    %499 = vmatpush1.bf16.msra.mxu0 %v210
    %500 = vmatprep.subr.bf16.mxu0 0
    %501 = vmatpush1.bf16.msra.mxu0 0
    %502 = vmatprep.subr.bf16.mxu0 0
    %503 = vmatpush1.bf16.msra.mxu0 0
    %504 = vmatprep.subr.bf16.mxu0 0
    %505 = vmatpush1.bf16.msra.mxu0 0
    %506 = vmatprep.subr.bf16.mxu0 0
    %507 = vmatpush1.bf16.msra.mxu0 0
    %508 = vmatprep.subr.bf16.mxu0 0
    %509 = vmatpush1.bf16.msra.mxu0 0
    %510 = vmatprep.subr.bf16.mxu0 0
    %511 = vmatpush1.bf16.msra.mxu0 0
    %512 = vmatprep.subr.bf16.mxu0 0
    %513 = vmatpush1.bf16.msra.mxu0 0
    %514 = vmatprep.subr.bf16.mxu0 0
    %515 = vmatpush1.bf16.msra.mxu0 0
    %516 = vmatprep.subr.bf16.mxu0 0
    %517 = vmatpush1.bf16.msra.mxu0 0
    %518 = vmatprep.subr.bf16.mxu0 0
    %519 = vmatpush1.bf16.msra.mxu0 0
    %520 = vmatprep.subr.bf16.mxu0 0
    %521 = vmatpush1.bf16.msra.mxu0 0
    %522 = vmatprep.subr.bf16.mxu0 0
    %523 = vmatpush1.bf16.msra.mxu0 0
    %524 = vmatprep.mubr.bf16.mxu0 0
    %525 = vmatmul.mubr.bf16.gmra.mrb[0].mxu0 %v339
    %v526 = vpop.f32.mrb[0].mxu0
    %v527 = vadd.f32 %v173, %v526
    %v528 = vpop.f32.mrb[0].mxu0
    %v529 = vadd.f32 %v177, %v528
    %v530 = vpop.f32.mrb[0].mxu0
    %v531 = vpop.f32.mrb[0].mxu0
    %532 = vdwg.mxu0
    %v534 = vrot.slane %v527, 6
    %v536 = vadd.f32 %v132, %v534
    %v537 = vxor.u32 %v536, 2147483648
    %v538 = vmul.f32 %v537, 1.442695
    %v539 = vpow.pop %v538
    %v540 = vadd.f32 %v539, 1.0
    %v541 = vrcp.pop %v540
    %v542 = vmul.f32 1.0, %v541
    %v544 = vrot.slane %v529, 6
    %v546 = vmul.f32 %v542, %v544
    %v547 = vadd.f32 %v134, %v546
    %v548 = vtanh.pop %v547
    %v549 = vsub.f32 1.0, %v542
    %551 = vrot.lane.b32.xlu0 %v548, 64
    %v552 = vpop.permute.xlu0 %551
    %v554 = vmul.f32 %v549, %v552
    %v556 = vrot.slane %v282, 6
    %v558 = vmul.f32 %v542, %v556
    %v559 = vadd.f32 %v554, %v558
    %v560 = vpack.c.bf16 %v559, %v559
    %v562 = vrot.slane %v560, 1
    %563 = vrot.lane.b32.xlu0 %v562, 64
    %v564 = vpop.permute.xlu0 %563
    %v566 = vsel %vm220, %v564, 0
    %568 = vmatprep.subr.bf16.mxu0 %v323
    %569 = vmatpush1.bf16.msra.mxu0 %v322
    %570 = vmatprep.subr.bf16.mxu0 %v325
    %571 = vmatpush1.bf16.msra.mxu0 %v324
    %572 = vmatprep.subr.bf16.mxu0 %v327
    %573 = vmatpush1.bf16.msra.mxu0 %v326
    %574 = vmatprep.subr.bf16.mxu0 %v329
    %575 = vmatpush1.bf16.msra.mxu0 %v328
    %576 = vmatprep.subr.bf16.mxu0 0
    %577 = vmatpush1.bf16.msra.mxu0 0
    %578 = vmatprep.subr.bf16.mxu0 0
    %579 = vmatpush1.bf16.msra.mxu0 0
    %580 = vmatprep.subr.bf16.mxu0 0
    %581 = vmatpush1.bf16.msra.mxu0 0
    %582 = vmatprep.subr.bf16.mxu0 0
    %583 = vmatpush1.bf16.msra.mxu0 0
    %584 = vmatprep.subr.bf16.mxu0 0
    %585 = vmatpush1.bf16.msra.mxu0 0
    %586 = vmatprep.subr.bf16.mxu0 0
    %587 = vmatpush1.bf16.msra.mxu0 0
    %588 = vmatprep.subr.bf16.mxu0 0
    %589 = vmatpush1.bf16.msra.mxu0 0
    %590 = vmatprep.subr.bf16.mxu0 0
    %591 = vmatpush1.bf16.msra.mxu0 0
    %592 = vmatprep.subr.bf16.mxu0 0
    %593 = vmatpush1.bf16.msra.mxu0 0
    %594 = vmatprep.subr.bf16.mxu0 0
    %595 = vmatpush1.bf16.msra.mxu0 0
    %596 = vmatprep.subr.bf16.mxu0 0
    %597 = vmatpush1.bf16.msra.mxu0 0
    %598 = vmatprep.subr.bf16.mxu0 0
    %599 = vmatpush1.bf16.msra.mxu0 0
    %600 = vmatprep.mubr.bf16.mxu0 0
    %601 = vmatmul.mubr.bf16.gmra.mrb[0].mxu0 %v566
    %v602 = vpop.f32.mrb[0].mxu0
    %v603 = vadd.f32 %v288, %v602
    %v604 = vpop.f32.mrb[0].mxu0
    %v605 = vadd.f32 %v292, %v604
    %v606 = vpop.f32.mrb[0].mxu0
    %v607 = vpop.f32.mrb[0].mxu0
    %608 = vdwg.mxu0
    %v609 = vpack.c.bf16 %v491, %v491
    %611 = vrot.lane.b32.xlu0 %v609, 64
    %v612 = vpop.permute.xlu0 %611
    %v614 = vsel %vm220, %v612, 0
    %616 = vmatprep.subr.bf16.mxu0 %v418
    %617 = vmatpush1.bf16.msra.mxu0 %v417
    %618 = vmatprep.subr.bf16.mxu0 %v420
    %619 = vmatpush1.bf16.msra.mxu0 %v419
    %620 = vmatprep.subr.bf16.mxu0 %v422
    %621 = vmatpush1.bf16.msra.mxu0 %v421
    %622 = vmatprep.subr.bf16.mxu0 %v424
    %623 = vmatpush1.bf16.msra.mxu0 %v423
    %624 = vmatprep.subr.bf16.mxu0 0
    %625 = vmatpush1.bf16.msra.mxu0 0
    %626 = vmatprep.subr.bf16.mxu0 0
    %627 = vmatpush1.bf16.msra.mxu0 0
    %628 = vmatprep.subr.bf16.mxu0 0
    %629 = vmatpush1.bf16.msra.mxu0 0
    %630 = vmatprep.subr.bf16.mxu0 0
    %631 = vmatpush1.bf16.msra.mxu0 0
    %632 = vmatprep.subr.bf16.mxu0 0
    %633 = vmatpush1.bf16.msra.mxu0 0
    %634 = vmatprep.subr.bf16.mxu0 0
    %635 = vmatpush1.bf16.msra.mxu0 0
    %636 = vmatprep.subr.bf16.mxu0 0
    %637 = vmatpush1.bf16.msra.mxu0 0
    %638 = vmatprep.subr.bf16.mxu0 0
    %639 = vmatpush1.bf16.msra.mxu0 0
    %640 = vmatprep.subr.bf16.mxu0 0
    %641 = vmatpush1.bf16.msra.mxu0 0
    %642 = vmatprep.subr.bf16.mxu0 0
    %643 = vmatpush1.bf16.msra.mxu0 0
    %644 = vmatprep.subr.bf16.mxu0 0
    %645 = vmatpush1.bf16.msra.mxu0 0
    %646 = vmatprep.subr.bf16.mxu0 0
    %647 = vmatpush1.bf16.msra.mxu0 0
    %648 = vmatprep.mubr.bf16.mxu0 0
    %649 = vmatmul.mubr.bf16.gmra.mrb[0].mxu0 %v614
    %v650 = vpop.f32.mrb[0].mxu0
    %v651 = vadd.f32 %v386, %v650
    %v652 = vpop.f32.mrb[0].mxu0
    %v653 = vadd.f32 %v390, %v652
    %v654 = vpop.f32.mrb[0].mxu0
    %v655 = vpop.f32.mrb[0].mxu0
    %656 = vdwg.mxu0
    %v657 = vadd.f32 %v603, %v651
    %v658 = vxor.u32 %v657, 2147483648
    %v659 = vmul.f32 %v658, 1.442695
    %v660 = vpow.pop %v659
    %v661 = vadd.f32 %v660, 1.0
    %v662 = vrcp.pop %v661
    %v663 = vmul.f32 1.0, %v662
    %v664 = vmul.f32 %v663, %v653
    %v665 = vadd.f32 %v605, %v664
    %v666 = vtanh.pop %v665
    %v667 = vsub.f32 1.0, %v663
    %669 = vrot.lane.b32.xlu0 %v666, 64
    %v670 = vpop.permute.xlu0 %669
    %v672 = vmul.f32 %v667, %v670
    %v673 = vmul.f32 %v663, %v491
    %v674 = vadd.f32 %v672, %v673
    %675 = vmatprep.subr.bf16.mxu0 %v205
    %676 = vmatpush1.bf16.msra.mxu0 %v204
    %677 = vmatprep.subr.bf16.mxu0 %v207
    %678 = vmatpush1.bf16.msra.mxu0 %v206
    %679 = vmatprep.subr.bf16.mxu0 %v209
    %680 = vmatpush1.bf16.msra.mxu0 %v208
    %681 = vmatprep.subr.bf16.mxu0 %v211
    %682 = vmatpush1.bf16.msra.mxu0 %v210
    %683 = vmatprep.subr.bf16.mxu0 0
    %684 = vmatpush1.bf16.msra.mxu0 0
    %685 = vmatprep.subr.bf16.mxu0 0
    %686 = vmatpush1.bf16.msra.mxu0 0
    %687 = vmatprep.subr.bf16.mxu0 0
    %688 = vmatpush1.bf16.msra.mxu0 0
    %689 = vmatprep.subr.bf16.mxu0 0
    %690 = vmatpush1.bf16.msra.mxu0 0
    %691 = vmatprep.subr.bf16.mxu0 0
    %692 = vmatpush1.bf16.msra.mxu0 0
    %693 = vmatprep.subr.bf16.mxu0 0
    %694 = vmatpush1.bf16.msra.mxu0 0
    %695 = vmatprep.subr.bf16.mxu0 0
    %696 = vmatpush1.bf16.msra.mxu0 0
    %697 = vmatprep.subr.bf16.mxu0 0
    %698 = vmatpush1.bf16.msra.mxu0 0
    %699 = vmatprep.subr.bf16.mxu0 0
    %700 = vmatpush1.bf16.msra.mxu0 0
    %701 = vmatprep.subr.bf16.mxu0 0
    %702 = vmatpush1.bf16.msra.mxu0 0
    %703 = vmatprep.subr.bf16.mxu0 0
    %704 = vmatpush1.bf16.msra.mxu0 0
    %705 = vmatprep.subr.bf16.mxu0 0
    %706 = vmatpush1.bf16.msra.mxu0 0
    %707 = vmatprep.mubr.bf16.mxu0 0
    %708 = vmatmul.mubr.bf16.gmra.mrb[0].mxu0 %v566
    %v709 = vpop.f32.mrb[0].mxu0
    %v710 = vadd.f32 %v173, %v709
    %v711 = vpop.f32.mrb[0].mxu0
    %v712 = vadd.f32 %v177, %v711
    %v713 = vpop.f32.mrb[0].mxu0
    %v714 = vpop.f32.mrb[0].mxu0
    %715 = vdwg.mxu0
    %v717 = vrot.slane %v710, 4
    %v719 = vadd.f32 %v132, %v717
    %v720 = vxor.u32 %v719, 2147483648
    %v721 = vmul.f32 %v720, 1.442695
    %v722 = vpow.pop %v721
    %v723 = vadd.f32 %v722, 1.0
    %v724 = vrcp.pop %v723
    %v725 = vmul.f32 1.0, %v724
    %v727 = vrot.slane %v712, 4
    %v729 = vmul.f32 %v725, %v727
    %v730 = vadd.f32 %v134, %v729
    %v731 = vtanh.pop %v730
    %v732 = vsub.f32 1.0, %v725
    %734 = vrot.lane.b32.xlu0 %v731, 64
    %v735 = vpop.permute.xlu0 %734
    %v737 = vmul.f32 %v732, %v735
    %v739 = vrot.slane %v559, 6
    %v741 = vmul.f32 %v725, %v739
    %v742 = vadd.f32 %v737, %v741
    %v743 = vpack.c.bf16 %v742, %v742
    %v745 = vrot.slane %v743, 2
    %746 = vrot.lane.b32.xlu0 %v745, 64
    %v747 = vpop.permute.xlu0 %746
    %v749 = vsel %vm220, %v747, 0
    %751 = vmatprep.subr.bf16.mxu0 %v323
    %752 = vmatpush1.bf16.msra.mxu0 %v322
    %753 = vmatprep.subr.bf16.mxu0 %v325
    %754 = vmatpush1.bf16.msra.mxu0 %v324
    %755 = vmatprep.subr.bf16.mxu0 %v327
    %756 = vmatpush1.bf16.msra.mxu0 %v326
    %757 = vmatprep.subr.bf16.mxu0 %v329
    %758 = vmatpush1.bf16.msra.mxu0 %v328
    %759 = vmatprep.subr.bf16.mxu0 0
    %760 = vmatpush1.bf16.msra.mxu0 0
    %761 = vmatprep.subr.bf16.mxu0 0
    %762 = vmatpush1.bf16.msra.mxu0 0
    %763 = vmatprep.subr.bf16.mxu0 0
    %764 = vmatpush1.bf16.msra.mxu0 0
    %765 = vmatprep.subr.bf16.mxu0 0
    %766 = vmatpush1.bf16.msra.mxu0 0
    %767 = vmatprep.subr.bf16.mxu0 0
    %768 = vmatpush1.bf16.msra.mxu0 0
    %769 = vmatprep.subr.bf16.mxu0 0
    %770 = vmatpush1.bf16.msra.mxu0 0
    %771 = vmatprep.subr.bf16.mxu0 0
    %772 = vmatpush1.bf16.msra.mxu0 0
    %773 = vmatprep.subr.bf16.mxu0 0
    %774 = vmatpush1.bf16.msra.mxu0 0
    %775 = vmatprep.subr.bf16.mxu0 0
    %776 = vmatpush1.bf16.msra.mxu0 0
    %777 = vmatprep.subr.bf16.mxu0 0
    %778 = vmatpush1.bf16.msra.mxu0 0
    %779 = vmatprep.subr.bf16.mxu0 0
    %780 = vmatpush1.bf16.msra.mxu0 0
    %781 = vmatprep.subr.bf16.mxu0 0
    %782 = vmatpush1.bf16.msra.mxu0 0
    %783 = vmatprep.mubr.bf16.mxu0 0
    %784 = vmatmul.mubr.bf16.gmra.mrb[0].mxu0 %v749
    %v785 = vpop.f32.mrb[0].mxu0
    %v786 = vadd.f32 %v288, %v785
    %v787 = vpop.f32.mrb[0].mxu0
    %v788 = vadd.f32 %v292, %v787
    %v789 = vpop.f32.mrb[0].mxu0
    %v790 = vpop.f32.mrb[0].mxu0
    %791 = vdwg.mxu0
    %v792 = vpack.c.bf16 %v674, %v674
    %794 = vrot.lane.b32.xlu0 %v792, 64
    %v795 = vpop.permute.xlu0 %794
    %v797 = vsel %vm220, %v795, 0
    %799 = vmatprep.subr.bf16.mxu0 %v418
    %800 = vmatpush1.bf16.msra.mxu0 %v417
    %801 = vmatprep.subr.bf16.mxu0 %v420
    %802 = vmatpush1.bf16.msra.mxu0 %v419
    %803 = vmatprep.subr.bf16.mxu0 %v422
    %804 = vmatpush1.bf16.msra.mxu0 %v421
    %805 = vmatprep.subr.bf16.mxu0 %v424
    %806 = vmatpush1.bf16.msra.mxu0 %v423
    %807 = vmatprep.subr.bf16.mxu0 0
    %808 = vmatpush1.bf16.msra.mxu0 0
    %809 = vmatprep.subr.bf16.mxu0 0
    %810 = vmatpush1.bf16.msra.mxu0 0
    %811 = vmatprep.subr.bf16.mxu0 0
    %812 = vmatpush1.bf16.msra.mxu0 0
    %813 = vmatprep.subr.bf16.mxu0 0
    %814 = vmatpush1.bf16.msra.mxu0 0
    %815 = vmatprep.subr.bf16.mxu0 0
    %816 = vmatpush1.bf16.msra.mxu0 0
    %817 = vmatprep.subr.bf16.mxu0 0
    %818 = vmatpush1.bf16.msra.mxu0 0
    %819 = vmatprep.subr.bf16.mxu0 0
    %820 = vmatpush1.bf16.msra.mxu0 0
    %821 = vmatprep.subr.bf16.mxu0 0
    %822 = vmatpush1.bf16.msra.mxu0 0
    %823 = vmatprep.subr.bf16.mxu0 0
    %824 = vmatpush1.bf16.msra.mxu0 0
    %825 = vmatprep.subr.bf16.mxu0 0
    %826 = vmatpush1.bf16.msra.mxu0 0
    %827 = vmatprep.subr.bf16.mxu0 0
    %828 = vmatpush1.bf16.msra.mxu0 0
    %829 = vmatprep.subr.bf16.mxu0 0
    %830 = vmatpush1.bf16.msra.mxu0 0
    %831 = vmatprep.mubr.bf16.mxu0 0
    %832 = vmatmul.mubr.bf16.gmra.mrb[0].mxu0 %v797
    %v833 = vpop.f32.mrb[0].mxu0
    %v834 = vadd.f32 %v386, %v833
    %v835 = vpop.f32.mrb[0].mxu0
    %v836 = vadd.f32 %v390, %v835
    %v837 = vpop.f32.mrb[0].mxu0
    %v838 = vpop.f32.mrb[0].mxu0
    %839 = vdwg.mxu0
    %v840 = vadd.f32 %v786, %v834
    %v841 = vxor.u32 %v840, 2147483648
    %v842 = vmul.f32 %v841, 1.442695
    %v843 = vpow.pop %v842
    %v844 = vadd.f32 %v843, 1.0
    %v845 = vrcp.pop %v844
    %v846 = vmul.f32 1.0, %v845
    %v847 = vmul.f32 %v846, %v836
    %v848 = vadd.f32 %v788, %v847
    %v849 = vtanh.pop %v848
    %v850 = vsub.f32 1.0, %v846
    %852 = vrot.lane.b32.xlu0 %v849, 64
    %v853 = vpop.permute.xlu0 %852
    %v855 = vmul.f32 %v850, %v853
    %v856 = vmul.f32 %v846, %v674
    %v857 = vadd.f32 %v855, %v856
    %858 = vmatprep.subr.bf16.mxu0 %v205
    %859 = vmatpush1.bf16.msra.mxu0 %v204
    %860 = vmatprep.subr.bf16.mxu0 %v207
    %861 = vmatpush1.bf16.msra.mxu0 %v206
    %862 = vmatprep.subr.bf16.mxu0 %v209
    %863 = vmatpush1.bf16.msra.mxu0 %v208
    %864 = vmatprep.subr.bf16.mxu0 %v211
    %865 = vmatpush1.bf16.msra.mxu0 %v210
    %866 = vmatprep.subr.bf16.mxu0 0
    %867 = vmatpush1.bf16.msra.mxu0 0
    %868 = vmatprep.subr.bf16.mxu0 0
    %869 = vmatpush1.bf16.msra.mxu0 0
    %870 = vmatprep.subr.bf16.mxu0 0
    %871 = vmatpush1.bf16.msra.mxu0 0
    %872 = vmatprep.subr.bf16.mxu0 0
    %873 = vmatpush1.bf16.msra.mxu0 0
    %874 = vmatprep.subr.bf16.mxu0 0
    %875 = vmatpush1.bf16.msra.mxu0 0
    %876 = vmatprep.subr.bf16.mxu0 0
    %877 = vmatpush1.bf16.msra.mxu0 0
    %878 = vmatprep.subr.bf16.mxu0 0
    %879 = vmatpush1.bf16.msra.mxu0 0
    %880 = vmatprep.subr.bf16.mxu0 0
    %881 = vmatpush1.bf16.msra.mxu0 0
    %882 = vmatprep.subr.bf16.mxu0 0
    %883 = vmatpush1.bf16.msra.mxu0 0
    %884 = vmatprep.subr.bf16.mxu0 0
    %885 = vmatpush1.bf16.msra.mxu0 0
    %886 = vmatprep.subr.bf16.mxu0 0
    %887 = vmatpush1.bf16.msra.mxu0 0
    %888 = vmatprep.subr.bf16.mxu0 0
    %889 = vmatpush1.bf16.msra.mxu0 0
    %890 = vmatprep.mubr.bf16.mxu0 0
    %891 = vmatmul.mubr.bf16.gmra.mrb[0].mxu0 %v749
    %v892 = vpop.f32.mrb[0].mxu0
    %v893 = vadd.f32 %v173, %v892
    %v894 = vpop.f32.mrb[0].mxu0
    %v895 = vadd.f32 %v177, %v894
    %v896 = vpop.f32.mrb[0].mxu0
    %v897 = vpop.f32.mrb[0].mxu0
    %898 = vdwg.mxu0
    %v900 = vrot.slane %v893, 2
    %v902 = vadd.f32 %v132, %v900
    %v903 = vxor.u32 %v902, 2147483648
    %v904 = vmul.f32 %v903, 1.442695
    %v905 = vpow.pop %v904
    %v906 = vadd.f32 %v905, 1.0
    %v907 = vrcp.pop %v906
    %v908 = vmul.f32 1.0, %v907
    %v910 = vrot.slane %v895, 2
    %v912 = vmul.f32 %v908, %v910
    %v913 = vadd.f32 %v134, %v912
    %v914 = vtanh.pop %v913
    %v915 = vsub.f32 1.0, %v908
    %917 = vrot.lane.b32.xlu0 %v914, 64
    %v918 = vpop.permute.xlu0 %917
    %v920 = vmul.f32 %v915, %v918
    %v922 = vrot.slane %v742, 6
    %v924 = vmul.f32 %v908, %v922
    %v925 = vadd.f32 %v920, %v924
    %v926 = vpack.c.bf16 %v925, %v925
    %v928 = vrot.slane %v926, 3
    %929 = vrot.lane.b32.xlu0 %v928, 64
    %v930 = vpop.permute.xlu0 %929
    %v932 = vsel %vm220, %v930, 0
    %934 = vmatprep.subr.bf16.mxu0 %v323
    %935 = vmatpush1.bf16.msra.mxu0 %v322
    %936 = vmatprep.subr.bf16.mxu0 %v325
    %937 = vmatpush1.bf16.msra.mxu0 %v324
    %938 = vmatprep.subr.bf16.mxu0 %v327
    %939 = vmatpush1.bf16.msra.mxu0 %v326
    %940 = vmatprep.subr.bf16.mxu0 %v329
    %941 = vmatpush1.bf16.msra.mxu0 %v328
    %942 = vmatprep.subr.bf16.mxu0 0
    %943 = vmatpush1.bf16.msra.mxu0 0
    %944 = vmatprep.subr.bf16.mxu0 0
    %945 = vmatpush1.bf16.msra.mxu0 0
    %946 = vmatprep.subr.bf16.mxu0 0
    %947 = vmatpush1.bf16.msra.mxu0 0
    %948 = vmatprep.subr.bf16.mxu0 0
    %949 = vmatpush1.bf16.msra.mxu0 0
    %950 = vmatprep.subr.bf16.mxu0 0
    %951 = vmatpush1.bf16.msra.mxu0 0
    %952 = vmatprep.subr.bf16.mxu0 0
    %953 = vmatpush1.bf16.msra.mxu0 0
    %954 = vmatprep.subr.bf16.mxu0 0
    %955 = vmatpush1.bf16.msra.mxu0 0
    %956 = vmatprep.subr.bf16.mxu0 0
    %957 = vmatpush1.bf16.msra.mxu0 0
    %958 = vmatprep.subr.bf16.mxu0 0
    %959 = vmatpush1.bf16.msra.mxu0 0
    %960 = vmatprep.subr.bf16.mxu0 0
    %961 = vmatpush1.bf16.msra.mxu0 0
    %962 = vmatprep.subr.bf16.mxu0 0
    %963 = vmatpush1.bf16.msra.mxu0 0
    %964 = vmatprep.subr.bf16.mxu0 0
    %965 = vmatpush1.bf16.msra.mxu0 0
    %966 = vmatprep.mubr.bf16.mxu0 0
    %967 = vmatmul.mubr.bf16.gmra.mrb[0].mxu0 %v932
    %v968 = vpop.f32.mrb[0].mxu0
    %v969 = vadd.f32 %v288, %v968
    %v970 = vpop.f32.mrb[0].mxu0
    %v971 = vadd.f32 %v292, %v970
    %v972 = vpop.f32.mrb[0].mxu0
    %v973 = vpop.f32.mrb[0].mxu0
    %974 = vdwg.mxu0
    %v975 = vpack.c.bf16 %v857, %v857
    %977 = vrot.lane.b32.xlu0 %v975, 64
    %v978 = vpop.permute.xlu0 %977
    %v980 = vsel %vm220, %v978, 0
    %982 = vmatprep.subr.bf16.mxu0 %v418
    %983 = vmatpush1.bf16.msra.mxu0 %v417
    %984 = vmatprep.subr.bf16.mxu0 %v420
    %985 = vmatpush1.bf16.msra.mxu0 %v419
    %986 = vmatprep.subr.bf16.mxu0 %v422
    %987 = vmatpush1.bf16.msra.mxu0 %v421
    %988 = vmatprep.subr.bf16.mxu0 %v424
    %989 = vmatpush1.bf16.msra.mxu0 %v423
    %990 = vmatprep.subr.bf16.mxu0 0
    %991 = vmatpush1.bf16.msra.mxu0 0
    %992 = vmatprep.subr.bf16.mxu0 0
    %993 = vmatpush1.bf16.msra.mxu0 0
    %994 = vmatprep.subr.bf16.mxu0 0
    %995 = vmatpush1.bf16.msra.mxu0 0
    %996 = vmatprep.subr.bf16.mxu0 0
    %997 = vmatpush1.bf16.msra.mxu0 0
    %998 = vmatprep.subr.bf16.mxu0 0
    %999 = vmatpush1.bf16.msra.mxu0 0
    %1000 = vmatprep.subr.bf16.mxu0 0
    %1001 = vmatpush1.bf16.msra.mxu0 0
    %1002 = vmatprep.subr.bf16.mxu0 0
    %1003 = vmatpush1.bf16.msra.mxu0 0
    %1004 = vmatprep.subr.bf16.mxu0 0
    %1005 = vmatpush1.bf16.msra.mxu0 0
    %1006 = vmatprep.subr.bf16.mxu0 0
    %1007 = vmatpush1.bf16.msra.mxu0 0
    %1008 = vmatprep.subr.bf16.mxu0 0
    %1009 = vmatpush1.bf16.msra.mxu0 0
    %1010 = vmatprep.subr.bf16.mxu0 0
    %1011 = vmatpush1.bf16.msra.mxu0 0
    %1012 = vmatprep.subr.bf16.mxu0 0
    %1013 = vmatpush1.bf16.msra.mxu0 0
    %1014 = vmatprep.mubr.bf16.mxu0 0
    %1015 = vmatmul.mubr.bf16.gmra.mrb[0].mxu0 %v980
    %v1016 = vpop.f32.mrb[0].mxu0
    %v1017 = vadd.f32 %v386, %v1016
    %v1018 = vpop.f32.mrb[0].mxu0
    %v1019 = vadd.f32 %v390, %v1018
    %v1020 = vpop.f32.mrb[0].mxu0
    %v1021 = vpop.f32.mrb[0].mxu0
    %1022 = vdwg.mxu0
    %v1023 = vadd.f32 %v969, %v1017
    %v1024 = vxor.u32 %v1023, 2147483648
    %v1025 = vmul.f32 %v1024, 1.442695
    %v1026 = vpow.pop %v1025
    %v1027 = vadd.f32 %v1026, 1.0
    %v1028 = vrcp.pop %v1027
    %v1029 = vmul.f32 1.0, %v1028
    %v1030 = vmul.f32 %v1029, %v1019
    %v1031 = vadd.f32 %v971, %v1030
    %v1032 = vtanh.pop %v1031
    %v1033 = vsub.f32 1.0, %v1029
    %1035 = vrot.lane.b32.xlu0 %v1032, 64
    %v1036 = vpop.permute.xlu0 %1035
    %v1038 = vmul.f32 %v1033, %v1036
    %v1039 = vmul.f32 %v1029, %v857
    %v1040 = vadd.f32 %v1038, %v1039
    %1041 = vmatprep.subr.bf16.mxu0 %v205
    %1042 = vmatpush1.bf16.msra.mxu0 %v204
    %1043 = vmatprep.subr.bf16.mxu0 %v207
    %1044 = vmatpush1.bf16.msra.mxu0 %v206
    %1045 = vmatprep.subr.bf16.mxu0 %v209
    %1046 = vmatpush1.bf16.msra.mxu0 %v208
    %1047 = vmatprep.subr.bf16.mxu0 %v211
    %1048 = vmatpush1.bf16.msra.mxu0 %v210
    %1049 = vmatprep.subr.bf16.mxu0 0
    %1050 = vmatpush1.bf16.msra.mxu0 0
    %1051 = vmatprep.subr.bf16.mxu0 0
    %1052 = vmatpush1.bf16.msra.mxu0 0
    %1053 = vmatprep.subr.bf16.mxu0 0
    %1054 = vmatpush1.bf16.msra.mxu0 0
    %1055 = vmatprep.subr.bf16.mxu0 0
    %1056 = vmatpush1.bf16.msra.mxu0 0
    %1057 = vmatprep.subr.bf16.mxu0 0
    %1058 = vmatpush1.bf16.msra.mxu0 0
    %1059 = vmatprep.subr.bf16.mxu0 0
    %1060 = vmatpush1.bf16.msra.mxu0 0
    %1061 = vmatprep.subr.bf16.mxu0 0
    %1062 = vmatpush1.bf16.msra.mxu0 0
    %1063 = vmatprep.subr.bf16.mxu0 0
    %1064 = vmatpush1.bf16.msra.mxu0 0
    %1065 = vmatprep.subr.bf16.mxu0 0
    %1066 = vmatpush1.bf16.msra.mxu0 0
    %1067 = vmatprep.subr.bf16.mxu0 0
    %1068 = vmatpush1.bf16.msra.mxu0 0
    %1069 = vmatprep.subr.bf16.mxu0 0
    %1070 = vmatpush1.bf16.msra.mxu0 0
    %1071 = vmatprep.subr.bf16.mxu0 0
    %1072 = vmatpush1.bf16.msra.mxu0 0
    %1073 = vmatprep.mubr.bf16.mxu0 0
    %1074 = vmatmul.mubr.bf16.gmra.mrb[0].mxu0 %v932
    %v1075 = vpop.f32.mrb[0].mxu0
    %v1076 = vadd.f32 %v173, %v1075
    %v1077 = vpop.f32.mrb[0].mxu0
    %v1078 = vadd.f32 %v177, %v1077
    %v1079 = vpop.f32.mrb[0].mxu0
    %v1080 = vpop.f32.mrb[0].mxu0
    %1081 = vdwg.mxu0
    %v1082 = vadd.f32 %v138, %v1076
    %v1083 = vxor.u32 %v1082, 2147483648
    %v1084 = vmul.f32 %v1083, 1.442695
    %v1085 = vpow.pop %v1084
    %v1086 = vadd.f32 %v1085, 1.0
    %v1087 = vrcp.pop %v1086
    %v1088 = vmul.f32 1.0, %v1087
    %v1089 = vmul.f32 %v1088, %v1078
    %v1090 = vadd.f32 %v140, %v1089
    %v1091 = vtanh.pop %v1090
    %v1092 = vsub.f32 1.0, %v1088
    %1094 = vrot.lane.b32.xlu0 %v1091, 64
    %v1095 = vpop.permute.xlu0 %1094
    %v1097 = vmul.f32 %v1092, %v1095
    %v1099 = vrot.slane %v925, 6
    %v1101 = vmul.f32 %v1088, %v1099
    %v1102 = vadd.f32 %v1097, %v1101
    %v1103 = vpack.c.bf16 %v1102, %v1102
    %1105 = vrot.lane.b32.xlu0 %v1103, 64
    %v1106 = vpop.permute.xlu0 %1105
    %v1108 = vsel %vm220, %v1106, 0
    %1110 = vmatprep.subr.bf16.mxu0 %v323
    %1111 = vmatpush1.bf16.msra.mxu0 %v322
    %1112 = vmatprep.subr.bf16.mxu0 %v325
    %1113 = vmatpush1.bf16.msra.mxu0 %v324
    %1114 = vmatprep.subr.bf16.mxu0 %v327
    %1115 = vmatpush1.bf16.msra.mxu0 %v326
    %1116 = vmatprep.subr.bf16.mxu0 %v329
    %1117 = vmatpush1.bf16.msra.mxu0 %v328
    %1118 = vmatprep.subr.bf16.mxu0 0
    %1119 = vmatpush1.bf16.msra.mxu0 0
    %1120 = vmatprep.subr.bf16.mxu0 0
    %1121 = vmatpush1.bf16.msra.mxu0 0
    %1122 = vmatprep.subr.bf16.mxu0 0
    %1123 = vmatpush1.bf16.msra.mxu0 0
    %1124 = vmatprep.subr.bf16.mxu0 0
    %1125 = vmatpush1.bf16.msra.mxu0 0
    %1126 = vmatprep.subr.bf16.mxu0 0
    %1127 = vmatpush1.bf16.msra.mxu0 0
    %1128 = vmatprep.subr.bf16.mxu0 0
    %1129 = vmatpush1.bf16.msra.mxu0 0
    %1130 = vmatprep.subr.bf16.mxu0 0
    %1131 = vmatpush1.bf16.msra.mxu0 0
    %1132 = vmatprep.subr.bf16.mxu0 0
    %1133 = vmatpush1.bf16.msra.mxu0 0
    %1134 = vmatprep.subr.bf16.mxu0 0
    %1135 = vmatpush1.bf16.msra.mxu0 0
    %1136 = vmatprep.subr.bf16.mxu0 0
    %1137 = vmatpush1.bf16.msra.mxu0 0
    %1138 = vmatprep.subr.bf16.mxu0 0
    %1139 = vmatpush1.bf16.msra.mxu0 0
    %1140 = vmatprep.subr.bf16.mxu0 0
    %1141 = vmatpush1.bf16.msra.mxu0 0
    %1142 = vmatprep.mubr.bf16.mxu0 0
    %1143 = vmatmul.mubr.bf16.gmra.mrb[0].mxu0 %v1108
    %v1144 = vpop.f32.mrb[0].mxu0
    %v1145 = vadd.f32 %v288, %v1144
    %v1146 = vpop.f32.mrb[0].mxu0
    %v1147 = vadd.f32 %v292, %v1146
    %v1148 = vpop.f32.mrb[0].mxu0
    %v1149 = vpop.f32.mrb[0].mxu0
    %1150 = vdwg.mxu0
    %v1151 = vpack.c.bf16 %v1040, %v1040
    %1153 = vrot.lane.b32.xlu0 %v1151, 64
    %v1154 = vpop.permute.xlu0 %1153
    %v1156 = vsel %vm220, %v1154, 0
    %1158 = vmatprep.subr.bf16.mxu0 %v418
    %1159 = vmatpush1.bf16.msra.mxu0 %v417
    %1160 = vmatprep.subr.bf16.mxu0 %v420
    %1161 = vmatpush1.bf16.msra.mxu0 %v419
    %1162 = vmatprep.subr.bf16.mxu0 %v422
    %1163 = vmatpush1.bf16.msra.mxu0 %v421
    %1164 = vmatprep.subr.bf16.mxu0 %v424
    %1165 = vmatpush1.bf16.msra.mxu0 %v423
    %1166 = vmatprep.subr.bf16.mxu0 0
    %1167 = vmatpush1.bf16.msra.mxu0 0
    %1168 = vmatprep.subr.bf16.mxu0 0
    %1169 = vmatpush1.bf16.msra.mxu0 0
    %1170 = vmatprep.subr.bf16.mxu0 0
    %1171 = vmatpush1.bf16.msra.mxu0 0
    %1172 = vmatprep.subr.bf16.mxu0 0
    %1173 = vmatpush1.bf16.msra.mxu0 0
    %1174 = vmatprep.subr.bf16.mxu0 0
    %1175 = vmatpush1.bf16.msra.mxu0 0
    %1176 = vmatprep.subr.bf16.mxu0 0
    %1177 = vmatpush1.bf16.msra.mxu0 0
    %1178 = vmatprep.subr.bf16.mxu0 0
    %1179 = vmatpush1.bf16.msra.mxu0 0
    %1180 = vmatprep.subr.bf16.mxu0 0
    %1181 = vmatpush1.bf16.msra.mxu0 0
    %1182 = vmatprep.subr.bf16.mxu0 0
    %1183 = vmatpush1.bf16.msra.mxu0 0
    %1184 = vmatprep.subr.bf16.mxu0 0
    %1185 = vmatpush1.bf16.msra.mxu0 0
    %1186 = vmatprep.subr.bf16.mxu0 0
    %1187 = vmatpush1.bf16.msra.mxu0 0
    %1188 = vmatprep.subr.bf16.mxu0 0
    %1189 = vmatpush1.bf16.msra.mxu0 0
    %1190 = vmatprep.mubr.bf16.mxu0 0
    %1191 = vmatmul.mubr.bf16.gmra.mrb[0].mxu0 %v1156
    %v1192 = vpop.f32.mrb[0].mxu0
    %v1193 = vadd.f32 %v386, %v1192
    %v1194 = vpop.f32.mrb[0].mxu0
    %v1195 = vadd.f32 %v390, %v1194
    %v1196 = vpop.f32.mrb[0].mxu0
    %v1197 = vpop.f32.mrb[0].mxu0
    %1198 = vdwg.mxu0
    %v1199 = vadd.f32 %v1145, %v1193
    %v1200 = vxor.u32 %v1199, 2147483648
    %v1201 = vmul.f32 %v1200, 1.442695
    %v1202 = vpow.pop %v1201
    %v1203 = vadd.f32 %v1202, 1.0
    %v1204 = vrcp.pop %v1203
    %v1205 = vmul.f32 1.0, %v1204
    %v1206 = vmul.f32 %v1205, %v1195
    %v1207 = vadd.f32 %v1147, %v1206
    %v1208 = vtanh.pop %v1207
    %v1209 = vsub.f32 1.0, %v1205
    %1211 = vrot.lane.b32.xlu0 %v1208, 64
    %v1212 = vpop.permute.xlu0 %1211
    %v1214 = vmul.f32 %v1209, %v1212
    %v1215 = vmul.f32 %v1205, %v1040
    %v1216 = vadd.f32 %v1214, %v1215
    %1217 = vmatprep.subr.bf16.mxu0 %v205
    %1218 = vmatpush1.bf16.msra.mxu0 %v204
    %1219 = vmatprep.subr.bf16.mxu0 %v207
    %1220 = vmatpush1.bf16.msra.mxu0 %v206
    %1221 = vmatprep.subr.bf16.mxu0 %v209
    %1222 = vmatpush1.bf16.msra.mxu0 %v208
    %1223 = vmatprep.subr.bf16.mxu0 %v211
    %1224 = vmatpush1.bf16.msra.mxu0 %v210
    %1225 = vmatprep.subr.bf16.mxu0 0
    %1226 = vmatpush1.bf16.msra.mxu0 0
    %1227 = vmatprep.subr.bf16.mxu0 0
    %1228 = vmatpush1.bf16.msra.mxu0 0
    %1229 = vmatprep.subr.bf16.mxu0 0
    %1230 = vmatpush1.bf16.msra.mxu0 0
    %1231 = vmatprep.subr.bf16.mxu0 0
    %1232 = vmatpush1.bf16.msra.mxu0 0
    %1233 = vmatprep.subr.bf16.mxu0 0
    %1234 = vmatpush1.bf16.msra.mxu0 0
    %1235 = vmatprep.subr.bf16.mxu0 0
    %1236 = vmatpush1.bf16.msra.mxu0 0
    %1237 = vmatprep.subr.bf16.mxu0 0
    %1238 = vmatpush1.bf16.msra.mxu0 0
    %1239 = vmatprep.subr.bf16.mxu0 0
    %1240 = vmatpush1.bf16.msra.mxu0 0
    %1241 = vmatprep.subr.bf16.mxu0 0
    %1242 = vmatpush1.bf16.msra.mxu0 0
    %1243 = vmatprep.subr.bf16.mxu0 0
    %1244 = vmatpush1.bf16.msra.mxu0 0
    %1245 = vmatprep.subr.bf16.mxu0 0
    %1246 = vmatpush1.bf16.msra.mxu0 0
    %1247 = vmatprep.subr.bf16.mxu0 0
    %1248 = vmatpush1.bf16.msra.mxu0 0
    %1249 = vmatprep.mubr.bf16.mxu0 0
    %1250 = vmatmul.mubr.bf16.gmra.mrb[0].mxu0 %v1108
    %v1251 = vpop.f32.mrb[0].mxu0
    %v1252 = vadd.f32 %v173, %v1251
    %v1253 = vpop.f32.mrb[0].mxu0
    %v1254 = vadd.f32 %v177, %v1253
    %v1255 = vpop.f32.mrb[0].mxu0
    %v1256 = vpop.f32.mrb[0].mxu0
    %1257 = vdwg.mxu0
    %v1259 = vrot.slane %v1252, 6
    %v1261 = vadd.f32 %v138, %v1259
    %v1262 = vxor.u32 %v1261, 2147483648
    %v1263 = vmul.f32 %v1262, 1.442695
    %v1264 = vpow.pop %v1263
    %v1265 = vadd.f32 %v1264, 1.0
    %v1266 = vrcp.pop %v1265
    %v1267 = vmul.f32 1.0, %v1266
    %v1269 = vrot.slane %v1254, 6
    %v1271 = vmul.f32 %v1267, %v1269
    %v1272 = vadd.f32 %v140, %v1271
    %v1273 = vtanh.pop %v1272
    %v1274 = vsub.f32 1.0, %v1267
    %1276 = vrot.lane.b32.xlu0 %v1273, 64
    %v1277 = vpop.permute.xlu0 %1276
    %v1279 = vmul.f32 %v1274, %v1277
    %v1281 = vrot.slane %v1102, 6
    %v1283 = vmul.f32 %v1267, %v1281
    %v1284 = vadd.f32 %v1279, %v1283
    %v1285 = vpack.c.bf16 %v1284, %v1284
    %v1287 = vrot.slane %v1285, 1
    %1288 = vrot.lane.b32.xlu0 %v1287, 64
    %v1289 = vpop.permute.xlu0 %1288
    %v1291 = vsel %vm220, %v1289, 0
    %1293 = vmatprep.subr.bf16.mxu0 %v323
    %1294 = vmatpush1.bf16.msra.mxu0 %v322
    %1295 = vmatprep.subr.bf16.mxu0 %v325
    %1296 = vmatpush1.bf16.msra.mxu0 %v324
    %1297 = vmatprep.subr.bf16.mxu0 %v327
    %1298 = vmatpush1.bf16.msra.mxu0 %v326
    %1299 = vmatprep.subr.bf16.mxu0 %v329
    %1300 = vmatpush1.bf16.msra.mxu0 %v328
    %1301 = vmatprep.subr.bf16.mxu0 0
    %1302 = vmatpush1.bf16.msra.mxu0 0
    %1303 = vmatprep.subr.bf16.mxu0 0
    %1304 = vmatpush1.bf16.msra.mxu0 0
    %1305 = vmatprep.subr.bf16.mxu0 0
    %1306 = vmatpush1.bf16.msra.mxu0 0
    %1307 = vmatprep.subr.bf16.mxu0 0
    %1308 = vmatpush1.bf16.msra.mxu0 0
    %1309 = vmatprep.subr.bf16.mxu0 0
    %1310 = vmatpush1.bf16.msra.mxu0 0
    %1311 = vmatprep.subr.bf16.mxu0 0
    %1312 = vmatpush1.bf16.msra.mxu0 0
    %1313 = vmatprep.subr.bf16.mxu0 0
    %1314 = vmatpush1.bf16.msra.mxu0 0
    %1315 = vmatprep.subr.bf16.mxu0 0
    %1316 = vmatpush1.bf16.msra.mxu0 0
    %1317 = vmatprep.subr.bf16.mxu0 0
    %1318 = vmatpush1.bf16.msra.mxu0 0
    %1319 = vmatprep.subr.bf16.mxu0 0
    %1320 = vmatpush1.bf16.msra.mxu0 0
    %1321 = vmatprep.subr.bf16.mxu0 0
    %1322 = vmatpush1.bf16.msra.mxu0 0
    %1323 = vmatprep.subr.bf16.mxu0 0
    %1324 = vmatpush1.bf16.msra.mxu0 0
    %1325 = vmatprep.mubr.bf16.mxu0 0
    %1326 = vmatmul.mubr.bf16.gmra.mrb[0].mxu0 %v1291
    %v1327 = vpop.f32.mrb[0].mxu0
    %v1328 = vadd.f32 %v288, %v1327
    %v1329 = vpop.f32.mrb[0].mxu0
    %v1330 = vadd.f32 %v292, %v1329
    %v1331 = vpop.f32.mrb[0].mxu0
    %v1332 = vpop.f32.mrb[0].mxu0
    %1333 = vdwg.mxu0
    %v1334 = vpack.c.bf16 %v1216, %v1216
    %1336 = vrot.lane.b32.xlu0 %v1334, 64
    %v1337 = vpop.permute.xlu0 %1336
    %v1339 = vsel %vm220, %v1337, 0
    %1341 = vmatprep.subr.bf16.mxu0 %v418
    %1342 = vmatpush1.bf16.msra.mxu0 %v417
    %1343 = vmatprep.subr.bf16.mxu0 %v420
    %1344 = vmatpush1.bf16.msra.mxu0 %v419
    %1345 = vmatprep.subr.bf16.mxu0 %v422
    %1346 = vmatpush1.bf16.msra.mxu0 %v421
    %1347 = vmatprep.subr.bf16.mxu0 %v424
    %1348 = vmatpush1.bf16.msra.mxu0 %v423
    %1349 = vmatprep.subr.bf16.mxu0 0
    %1350 = vmatpush1.bf16.msra.mxu0 0
    %1351 = vmatprep.subr.bf16.mxu0 0
    %1352 = vmatpush1.bf16.msra.mxu0 0
    %1353 = vmatprep.subr.bf16.mxu0 0
    %1354 = vmatpush1.bf16.msra.mxu0 0
    %1355 = vmatprep.subr.bf16.mxu0 0
    %1356 = vmatpush1.bf16.msra.mxu0 0
    %1357 = vmatprep.subr.bf16.mxu0 0
    %1358 = vmatpush1.bf16.msra.mxu0 0
    %1359 = vmatprep.subr.bf16.mxu0 0
    %1360 = vmatpush1.bf16.msra.mxu0 0
    %1361 = vmatprep.subr.bf16.mxu0 0
    %1362 = vmatpush1.bf16.msra.mxu0 0
    %1363 = vmatprep.subr.bf16.mxu0 0
    %1364 = vmatpush1.bf16.msra.mxu0 0
    %1365 = vmatprep.subr.bf16.mxu0 0
    %1366 = vmatpush1.bf16.msra.mxu0 0
    %1367 = vmatprep.subr.bf16.mxu0 0
    %1368 = vmatpush1.bf16.msra.mxu0 0
    %1369 = vmatprep.subr.bf16.mxu0 0
    %1370 = vmatpush1.bf16.msra.mxu0 0
    %1371 = vmatprep.subr.bf16.mxu0 0
    %1372 = vmatpush1.bf16.msra.mxu0 0
    %1373 = vmatprep.mubr.bf16.mxu0 0
    %1374 = vmatmul.mubr.bf16.gmra.mrb[0].mxu0 %v1339
    %v1375 = vpop.f32.mrb[0].mxu0
    %v1376 = vadd.f32 %v386, %v1375
    %v1377 = vpop.f32.mrb[0].mxu0
    %v1378 = vadd.f32 %v390, %v1377
    %v1379 = vpop.f32.mrb[0].mxu0
    %v1380 = vpop.f32.mrb[0].mxu0
    %1381 = vdwg.mxu0
    %v1382 = vadd.f32 %v1328, %v1376
    %v1383 = vxor.u32 %v1382, 2147483648
    %v1384 = vmul.f32 %v1383, 1.442695
    %v1385 = vpow.pop %v1384
    %v1386 = vadd.f32 %v1385, 1.0
    %v1387 = vrcp.pop %v1386
    %v1388 = vmul.f32 1.0, %v1387
    %v1389 = vmul.f32 %v1388, %v1378
    %v1390 = vadd.f32 %v1330, %v1389
    %v1391 = vtanh.pop %v1390
    %v1392 = vsub.f32 1.0, %v1388
    %1394 = vrot.lane.b32.xlu0 %v1391, 64
    %v1395 = vpop.permute.xlu0 %1394
    %v1397 = vmul.f32 %v1392, %v1395
    %v1398 = vmul.f32 %v1388, %v1216
    %v1399 = vadd.f32 %v1397, %v1398
    %1400 = vmatprep.subr.bf16.mxu0 %v205
    %1401 = vmatpush1.bf16.msra.mxu0 %v204
    %1402 = vmatprep.subr.bf16.mxu0 %v207
    %1403 = vmatpush1.bf16.msra.mxu0 %v206
    %1404 = vmatprep.subr.bf16.mxu0 %v209
    %1405 = vmatpush1.bf16.msra.mxu0 %v208
    %1406 = vmatprep.subr.bf16.mxu0 %v211
    %1407 = vmatpush1.bf16.msra.mxu0 %v210
    %1408 = vmatprep.subr.bf16.mxu0 0
    %1409 = vmatpush1.bf16.msra.mxu0 0
    %1410 = vmatprep.subr.bf16.mxu0 0
    %1411 = vmatpush1.bf16.msra.mxu0 0
    %1412 = vmatprep.subr.bf16.mxu0 0
    %1413 = vmatpush1.bf16.msra.mxu0 0
    %1414 = vmatprep.subr.bf16.mxu0 0
    %1415 = vmatpush1.bf16.msra.mxu0 0
    %1416 = vmatprep.subr.bf16.mxu0 0
    %1417 = vmatpush1.bf16.msra.mxu0 0
    %1418 = vmatprep.subr.bf16.mxu0 0
    %1419 = vmatpush1.bf16.msra.mxu0 0
    %1420 = vmatprep.subr.bf16.mxu0 0
    %1421 = vmatpush1.bf16.msra.mxu0 0
    %1422 = vmatprep.subr.bf16.mxu0 0
    %1423 = vmatpush1.bf16.msra.mxu0 0
    %1424 = vmatprep.subr.bf16.mxu0 0
    %1425 = vmatpush1.bf16.msra.mxu0 0
    %1426 = vmatprep.subr.bf16.mxu0 0
    %1427 = vmatpush1.bf16.msra.mxu0 0
    %1428 = vmatprep.subr.bf16.mxu0 0
    %1429 = vmatpush1.bf16.msra.mxu0 0
    %1430 = vmatprep.subr.bf16.mxu0 0
    %1431 = vmatpush1.bf16.msra.mxu0 0
    %1432 = vmatprep.mubr.bf16.mxu0 0
    %1433 = vmatmul.mubr.bf16.gmra.mrb[0].mxu0 %v1291
    %v1434 = vpop.f32.mrb[0].mxu0
    %v1435 = vadd.f32 %v173, %v1434
    %v1436 = vpop.f32.mrb[0].mxu0
    %v1437 = vadd.f32 %v177, %v1436
    %v1438 = vpop.f32.mrb[0].mxu0
    %v1439 = vpop.f32.mrb[0].mxu0
    %1440 = vdwg.mxu0
    %v1442 = vrot.slane %v1435, 4
    %v1444 = vadd.f32 %v138, %v1442
    %v1445 = vxor.u32 %v1444, 2147483648
    %v1446 = vmul.f32 %v1445, 1.442695
    %v1447 = vpow.pop %v1446
    %v1448 = vadd.f32 %v1447, 1.0
    %v1449 = vrcp.pop %v1448
    %v1450 = vmul.f32 1.0, %v1449
    %v1452 = vrot.slane %v1437, 4
    %v1454 = vmul.f32 %v1450, %v1452
    %v1455 = vadd.f32 %v140, %v1454
    %v1456 = vtanh.pop %v1455
    %v1457 = vsub.f32 1.0, %v1450
    %1459 = vrot.lane.b32.xlu0 %v1456, 64
    %v1460 = vpop.permute.xlu0 %1459
    %v1462 = vmul.f32 %v1457, %v1460
    %v1464 = vrot.slane %v1284, 6
    %v1466 = vmul.f32 %v1450, %v1464
    %v1467 = vadd.f32 %v1462, %v1466
    %v1468 = vpack.c.bf16 %v1467, %v1467
    %v1470 = vrot.slane %v1468, 2
    %1471 = vrot.lane.b32.xlu0 %v1470, 64
    %v1472 = vpop.permute.xlu0 %1471
    %v1474 = vsel %vm220, %v1472, 0
    %1476 = vmatprep.subr.bf16.mxu0 %v323
    %1477 = vmatpush1.bf16.msra.mxu0 %v322
    %1478 = vmatprep.subr.bf16.mxu0 %v325
    %1479 = vmatpush1.bf16.msra.mxu0 %v324
    %1480 = vmatprep.subr.bf16.mxu0 %v327
    %1481 = vmatpush1.bf16.msra.mxu0 %v326
    %1482 = vmatprep.subr.bf16.mxu0 %v329
    %1483 = vmatpush1.bf16.msra.mxu0 %v328
    %1484 = vmatprep.subr.bf16.mxu0 0
    %1485 = vmatpush1.bf16.msra.mxu0 0
    %1486 = vmatprep.subr.bf16.mxu0 0
    %1487 = vmatpush1.bf16.msra.mxu0 0
    %1488 = vmatprep.subr.bf16.mxu0 0
    %1489 = vmatpush1.bf16.msra.mxu0 0
    %1490 = vmatprep.subr.bf16.mxu0 0
    %1491 = vmatpush1.bf16.msra.mxu0 0
    %1492 = vmatprep.subr.bf16.mxu0 0
    %1493 = vmatpush1.bf16.msra.mxu0 0
    %1494 = vmatprep.subr.bf16.mxu0 0
    %1495 = vmatpush1.bf16.msra.mxu0 0
    %1496 = vmatprep.subr.bf16.mxu0 0
    %1497 = vmatpush1.bf16.msra.mxu0 0
    %1498 = vmatprep.subr.bf16.mxu0 0
    %1499 = vmatpush1.bf16.msra.mxu0 0
    %1500 = vmatprep.subr.bf16.mxu0 0
    %1501 = vmatpush1.bf16.msra.mxu0 0
    %1502 = vmatprep.subr.bf16.mxu0 0
    %1503 = vmatpush1.bf16.msra.mxu0 0
    %1504 = vmatprep.subr.bf16.mxu0 0
    %1505 = vmatpush1.bf16.msra.mxu0 0
    %1506 = vmatprep.subr.bf16.mxu0 0
    %1507 = vmatpush1.bf16.msra.mxu0 0
    %1508 = vmatprep.mubr.bf16.mxu0 0
    %1509 = vmatmul.mubr.bf16.gmra.mrb[0].mxu0 %v1474
    %v1510 = vpop.f32.mrb[0].mxu0
    %v1511 = vadd.f32 %v288, %v1510
    %v1512 = vpop.f32.mrb[0].mxu0
    %v1513 = vadd.f32 %v292, %v1512
    %v1514 = vpop.f32.mrb[0].mxu0
    %v1515 = vpop.f32.mrb[0].mxu0
    %1516 = vdwg.mxu0
    %v1517 = vpack.c.bf16 %v1399, %v1399
    %1519 = vrot.lane.b32.xlu0 %v1517, 64
    %v1520 = vpop.permute.xlu0 %1519
    %v1522 = vsel %vm220, %v1520, 0
    %1524 = vmatprep.subr.bf16.mxu0 %v418
    %1525 = vmatpush1.bf16.msra.mxu0 %v417
    %1526 = vmatprep.subr.bf16.mxu0 %v420
    %1527 = vmatpush1.bf16.msra.mxu0 %v419
    %1528 = vmatprep.subr.bf16.mxu0 %v422
    %1529 = vmatpush1.bf16.msra.mxu0 %v421
    %1530 = vmatprep.subr.bf16.mxu0 %v424
    %1531 = vmatpush1.bf16.msra.mxu0 %v423
    %1532 = vmatprep.subr.bf16.mxu0 0
    %1533 = vmatpush1.bf16.msra.mxu0 0
    %1534 = vmatprep.subr.bf16.mxu0 0
    %1535 = vmatpush1.bf16.msra.mxu0 0
    %1536 = vmatprep.subr.bf16.mxu0 0
    %1537 = vmatpush1.bf16.msra.mxu0 0
    %1538 = vmatprep.subr.bf16.mxu0 0
    %1539 = vmatpush1.bf16.msra.mxu0 0
    %1540 = vmatprep.subr.bf16.mxu0 0
    %1541 = vmatpush1.bf16.msra.mxu0 0
    %1542 = vmatprep.subr.bf16.mxu0 0
    %1543 = vmatpush1.bf16.msra.mxu0 0
    %1544 = vmatprep.subr.bf16.mxu0 0
    %1545 = vmatpush1.bf16.msra.mxu0 0
    %1546 = vmatprep.subr.bf16.mxu0 0
    %1547 = vmatpush1.bf16.msra.mxu0 0
    %1548 = vmatprep.subr.bf16.mxu0 0
    %1549 = vmatpush1.bf16.msra.mxu0 0
    %1550 = vmatprep.subr.bf16.mxu0 0
    %1551 = vmatpush1.bf16.msra.mxu0 0
    %1552 = vmatprep.subr.bf16.mxu0 0
    %1553 = vmatpush1.bf16.msra.mxu0 0
    %1554 = vmatprep.subr.bf16.mxu0 0
    %1555 = vmatpush1.bf16.msra.mxu0 0
    %1556 = vmatprep.mubr.bf16.mxu0 0
    %1557 = vmatmul.mubr.bf16.gmra.mrb[0].mxu0 %v1522
    %v1558 = vpop.f32.mrb[0].mxu0
    %v1559 = vadd.f32 %v386, %v1558
    %v1560 = vpop.f32.mrb[0].mxu0
    %v1561 = vadd.f32 %v390, %v1560
    %v1562 = vpop.f32.mrb[0].mxu0
    %v1563 = vpop.f32.mrb[0].mxu0
    %1564 = vdwg.mxu0
    %v1565 = vadd.f32 %v1511, %v1559
    %v1566 = vxor.u32 %v1565, 2147483648
    %v1567 = vmul.f32 %v1566, 1.442695
    %v1568 = vpow.pop %v1567
    %v1569 = vadd.f32 %v1568, 1.0
    %v1570 = vrcp.pop %v1569
    %v1571 = vmul.f32 1.0, %v1570
    %v1572 = vmul.f32 %v1571, %v1561
    %v1573 = vadd.f32 %v1513, %v1572
    %v1574 = vtanh.pop %v1573
    %v1575 = vsub.f32 1.0, %v1571
    %1577 = vrot.lane.b32.xlu0 %v1574, 64
    %v1578 = vpop.permute.xlu0 %1577
    %v1580 = vmul.f32 %v1575, %v1578
    %v1581 = vmul.f32 %v1571, %v1399
    %v1582 = vadd.f32 %v1580, %v1581
    %1583 = vmatprep.subr.bf16.mxu0 %v205
    %1584 = vmatpush1.bf16.msra.mxu0 %v204
    %1585 = vmatprep.subr.bf16.mxu0 %v207
    %1586 = vmatpush1.bf16.msra.mxu0 %v206
    %1587 = vmatprep.subr.bf16.mxu0 %v209
    %1588 = vmatpush1.bf16.msra.mxu0 %v208
    %1589 = vmatprep.subr.bf16.mxu0 %v211
    %1590 = vmatpush1.bf16.msra.mxu0 %v210
    %1591 = vmatprep.subr.bf16.mxu0 0
    %1592 = vmatpush1.bf16.msra.mxu0 0
    %1593 = vmatprep.subr.bf16.mxu0 0
    %1594 = vmatpush1.bf16.msra.mxu0 0
    %1595 = vmatprep.subr.bf16.mxu0 0
    %1596 = vmatpush1.bf16.msra.mxu0 0
    %1597 = vmatprep.subr.bf16.mxu0 0
    %1598 = vmatpush1.bf16.msra.mxu0 0
    %1599 = vmatprep.subr.bf16.mxu0 0
    %1600 = vmatpush1.bf16.msra.mxu0 0
    %1601 = vmatprep.subr.bf16.mxu0 0
    %1602 = vmatpush1.bf16.msra.mxu0 0
    %1603 = vmatprep.subr.bf16.mxu0 0
    %1604 = vmatpush1.bf16.msra.mxu0 0
    %1605 = vmatprep.subr.bf16.mxu0 0
    %1606 = vmatpush1.bf16.msra.mxu0 0
    %1607 = vmatprep.subr.bf16.mxu0 0
    %1608 = vmatpush1.bf16.msra.mxu0 0
    %1609 = vmatprep.subr.bf16.mxu0 0
    %1610 = vmatpush1.bf16.msra.mxu0 0
    %1611 = vmatprep.subr.bf16.mxu0 0
    %1612 = vmatpush1.bf16.msra.mxu0 0
    %1613 = vmatprep.subr.bf16.mxu0 0
    %1614 = vmatpush1.bf16.msra.mxu0 0
    %1615 = vmatprep.mubr.bf16.mxu0 0
    %1616 = vmatmul.mubr.bf16.gmra.mrb[0].mxu0 %v1474
    %v1617 = vpop.f32.mrb[0].mxu0
    %v1618 = vadd.f32 %v173, %v1617
    %v1619 = vpop.f32.mrb[0].mxu0
    %v1620 = vadd.f32 %v177, %v1619
    %v1621 = vpop.f32.mrb[0].mxu0
    %v1622 = vpop.f32.mrb[0].mxu0
    %1623 = vdwg.mxu0
    %v1625 = vrot.slane %v1618, 2
    %v1627 = vadd.f32 %v138, %v1625
    %v1628 = vxor.u32 %v1627, 2147483648
    %v1629 = vmul.f32 %v1628, 1.442695
    %v1630 = vpow.pop %v1629
    %v1631 = vadd.f32 %v1630, 1.0
    %v1632 = vrcp.pop %v1631
    %v1633 = vmul.f32 1.0, %v1632
    %v1635 = vrot.slane %v1620, 2
    %v1637 = vmul.f32 %v1633, %v1635
    %v1638 = vadd.f32 %v140, %v1637
    %v1639 = vtanh.pop %v1638
    %v1640 = vsub.f32 1.0, %v1633
    %1642 = vrot.lane.b32.xlu0 %v1639, 64
    %v1643 = vpop.permute.xlu0 %1642
    %v1645 = vmul.f32 %v1640, %v1643
    %v1647 = vrot.slane %v1467, 6
    %v1649 = vmul.f32 %v1633, %v1647
    %v1650 = vadd.f32 %v1645, %v1649
    %v1651 = vpack.c.bf16 %v1650, %v1650
    %v1653 = vrot.slane %v1651, 3
    %1654 = vrot.lane.b32.xlu0 %v1653, 64
    %v1655 = vpop.permute.xlu0 %1654
    %v1657 = vsel %vm220, %v1655, 0
    %1659 = vmatprep.subr.bf16.mxu0 %v323
    %1660 = vmatpush1.bf16.msra.mxu0 %v322
    %1661 = vmatprep.subr.bf16.mxu0 %v325
    %1662 = vmatpush1.bf16.msra.mxu0 %v324
    %1663 = vmatprep.subr.bf16.mxu0 %v327
    %1664 = vmatpush1.bf16.msra.mxu0 %v326
    %1665 = vmatprep.subr.bf16.mxu0 %v329
    %1666 = vmatpush1.bf16.msra.mxu0 %v328
    %1667 = vmatprep.subr.bf16.mxu0 0
    %1668 = vmatpush1.bf16.msra.mxu0 0
    %1669 = vmatprep.subr.bf16.mxu0 0
    %1670 = vmatpush1.bf16.msra.mxu0 0
    %1671 = vmatprep.subr.bf16.mxu0 0
    %1672 = vmatpush1.bf16.msra.mxu0 0
    %1673 = vmatprep.subr.bf16.mxu0 0
    %1674 = vmatpush1.bf16.msra.mxu0 0
    %1675 = vmatprep.subr.bf16.mxu0 0
    %1676 = vmatpush1.bf16.msra.mxu0 0
    %1677 = vmatprep.subr.bf16.mxu0 0
    %1678 = vmatpush1.bf16.msra.mxu0 0
    %1679 = vmatprep.subr.bf16.mxu0 0
    %1680 = vmatpush1.bf16.msra.mxu0 0
    %1681 = vmatprep.subr.bf16.mxu0 0
    %1682 = vmatpush1.bf16.msra.mxu0 0
    %1683 = vmatprep.subr.bf16.mxu0 0
    %1684 = vmatpush1.bf16.msra.mxu0 0
    %1685 = vmatprep.subr.bf16.mxu0 0
    %1686 = vmatpush1.bf16.msra.mxu0 0
    %1687 = vmatprep.subr.bf16.mxu0 0
    %1688 = vmatpush1.bf16.msra.mxu0 0
    %1689 = vmatprep.subr.bf16.mxu0 0
    %1690 = vmatpush1.bf16.msra.mxu0 0
    %1691 = vmatprep.mubr.bf16.mxu0 0
    %1692 = vmatmul.mubr.bf16.gmra.mrb[0].mxu0 %v1657
    %v1693 = vpop.f32.mrb[0].mxu0
    %v1694 = vadd.f32 %v288, %v1693
    %v1695 = vpop.f32.mrb[0].mxu0
    %v1696 = vadd.f32 %v292, %v1695
    %v1697 = vpop.f32.mrb[0].mxu0
    %v1698 = vpop.f32.mrb[0].mxu0
    %1699 = vdwg.mxu0
    %v1700 = vpack.c.bf16 %v1582, %v1582
    %1702 = vrot.lane.b32.xlu0 %v1700, 64
    %v1703 = vpop.permute.xlu0 %1702
    %v1705 = vsel %vm220, %v1703, 0
    %1707 = vmatprep.subr.bf16.mxu0 %v418
    %1708 = vmatpush1.bf16.msra.mxu0 %v417
    %1709 = vmatprep.subr.bf16.mxu0 %v420
    %1710 = vmatpush1.bf16.msra.mxu0 %v419
    %1711 = vmatprep.subr.bf16.mxu0 %v422
    %1712 = vmatpush1.bf16.msra.mxu0 %v421
    %1713 = vmatprep.subr.bf16.mxu0 %v424
    %1714 = vmatpush1.bf16.msra.mxu0 %v423
    %1715 = vmatprep.subr.bf16.mxu0 0
    %1716 = vmatpush1.bf16.msra.mxu0 0
    %1717 = vmatprep.subr.bf16.mxu0 0
    %1718 = vmatpush1.bf16.msra.mxu0 0
    %1719 = vmatprep.subr.bf16.mxu0 0
    %1720 = vmatpush1.bf16.msra.mxu0 0
    %1721 = vmatprep.subr.bf16.mxu0 0
    %1722 = vmatpush1.bf16.msra.mxu0 0
    %1723 = vmatprep.subr.bf16.mxu0 0
    %1724 = vmatpush1.bf16.msra.mxu0 0
    %1725 = vmatprep.subr.bf16.mxu0 0
    %1726 = vmatpush1.bf16.msra.mxu0 0
    %1727 = vmatprep.subr.bf16.mxu0 0
    %1728 = vmatpush1.bf16.msra.mxu0 0
    %1729 = vmatprep.subr.bf16.mxu0 0
    %1730 = vmatpush1.bf16.msra.mxu0 0
    %1731 = vmatprep.subr.bf16.mxu0 0
    %1732 = vmatpush1.bf16.msra.mxu0 0
    %1733 = vmatprep.subr.bf16.mxu0 0
    %1734 = vmatpush1.bf16.msra.mxu0 0
    %1735 = vmatprep.subr.bf16.mxu0 0
    %1736 = vmatpush1.bf16.msra.mxu0 0
    %1737 = vmatprep.subr.bf16.mxu0 0
    %1738 = vmatpush1.bf16.msra.mxu0 0
    %1739 = vmatprep.mubr.bf16.mxu0 0
    %1740 = vmatmul.mubr.bf16.gmra.mrb[0].mxu0 %v1705
    %v1741 = vpop.f32.mrb[0].mxu0
    %v1742 = vadd.f32 %v386, %v1741
    %v1743 = vpop.f32.mrb[0].mxu0
    %v1744 = vadd.f32 %v390, %v1743
    %v1745 = vpop.f32.mrb[0].mxu0
    %v1746 = vpop.f32.mrb[0].mxu0
    %1747 = vdwg.mxu0
    %v1748 = vadd.f32 %v1694, %v1742
    %v1749 = vxor.u32 %v1748, 2147483648
    %v1750 = vmul.f32 %v1749, 1.442695
    %v1751 = vpow.pop %v1750
    %v1752 = vadd.f32 %v1751, 1.0
    %v1753 = vrcp.pop %v1752
    %v1754 = vmul.f32 1.0, %v1753
    %v1755 = vmul.f32 %v1754, %v1744
    %v1756 = vadd.f32 %v1696, %v1755
    %v1757 = vtanh.pop %v1756
    %v1758 = vsub.f32 1.0, %v1754
    %1760 = vrot.lane.b32.xlu0 %v1757, 64
    %v1761 = vpop.permute.xlu0 %1760
    %v1763 = vmul.f32 %v1758, %v1761
    %v1764 = vmul.f32 %v1754, %v1582
    %v1765 = vadd.f32 %v1763, %v1764
    %v1766 = vld [vmem:[%s9] sm:$0xff]
    %v1767 = vld [vmem:[%s9 + $0x8] sm:$0xff]
    %v1768 = vld [vmem:[%s9 + $0x10] sm:$0xff]
    %v1769 = vld [vmem:[%s9 + $0x18] sm:$0xff]
    %v1770 = vld [vmem:[%s9 + $0x20] sm:$0xff]
    %v1771 = vld [vmem:[%s9 + $0x28] sm:$0xff]
    %v1772 = vld [vmem:[%s9 + $0x30] sm:$0xff]
    %v1773 = vld [vmem:[%s9 + $0x38] sm:$0xff]
    %v1774 = vld [vmem:[%s10] sm:$0x1]
    %v1776 = vlaneseq
    %v1777 = vshrl.u32 %v1776, 7
    %v1778 = vsub.s32 0, %v1777
    %v1779 = vrot.slane %v1774, %v1778
    %1782 = vrot.lane.b32.xlu0 %v1765, 64
    %v1783 = vpop.permute.xlu0 %1782
    %v1784 = vsel %vm220, %v1783, 0
    %1786 = vmatprep.subr.mxu0 0.0
    %1787 = vmatpush1.msra.mxu0 %v1766
    %1788 = vmatprep.subr.mxu0 0.0
    %1789 = vmatpush1.msra.mxu0 %v1767
    %1790 = vmatprep.subr.mxu0 0.0
    %1791 = vmatpush1.msra.mxu0 %v1768
    %1792 = vmatprep.subr.mxu0 0.0
    %1793 = vmatpush1.msra.mxu0 %v1769
    %1794 = vmatprep.subr.mxu0 0.0
    %1795 = vmatpush1.msra.mxu0 %v1770
    %1796 = vmatprep.subr.mxu0 0.0
    %1797 = vmatpush1.msra.mxu0 %v1771
    %1798 = vmatprep.subr.mxu0 0.0
    %1799 = vmatpush1.msra.mxu0 %v1772
    %1800 = vmatprep.subr.mxu0 0.0
    %1801 = vmatpush1.msra.mxu0 %v1773
    %1802 = vmatprep.subr.mxu0 0.0
    %1803 = vmatpush1.msra.mxu0 0.0
    %1804 = vmatprep.subr.mxu0 0.0
    %1805 = vmatpush1.msra.mxu0 0.0
    %1806 = vmatprep.subr.mxu0 0.0
    %1807 = vmatpush1.msra.mxu0 0.0
    %1808 = vmatprep.subr.mxu0 0.0
    %1809 = vmatpush1.msra.mxu0 0.0
    %1810 = vmatprep.subr.mxu0 0.0
    %1811 = vmatpush1.msra.mxu0 0.0
    %1812 = vmatprep.subr.mxu0 0.0
    %1813 = vmatpush1.msra.mxu0 0.0
    %1814 = vmatprep.subr.mxu0 0.0
    %1815 = vmatpush1.msra.mxu0 0.0
    %1816 = vmatprep.subr.mxu0 0.0
    %1817 = vmatpush1.msra.mxu0 0.0
    %1818 = vmatprep.subr.mxu0 0.0
    %1819 = vmatpush1.msra.mxu0 0.0
    %1820 = vmatprep.subr.mxu0 0.0
    %1821 = vmatpush1.msra.mxu0 0.0
    %1822 = vmatprep.subr.mxu0 0.0
    %1823 = vmatpush1.msra.mxu0 0.0
    %1824 = vmatprep.subr.mxu0 0.0
    %1825 = vmatpush1.msra.mxu0 0.0
    %1826 = vmatprep.subr.mxu0 0.0
    %1827 = vmatpush1.msra.mxu0 0.0
    %1828 = vmatprep.subr.mxu0 0.0
    %1829 = vmatpush1.msra.mxu0 0.0
    %1830 = vmatprep.subr.mxu0 0.0
    %1831 = vmatpush1.msra.mxu0 0.0
    %1832 = vmatprep.subr.mxu0 0.0
    %1833 = vmatpush1.msra.mxu0 0.0
    %1834 = vmatprep.subr.mxu0 0.0
    %1835 = vmatpush1.msra.mxu0 0.0
    %1836 = vmatprep.subr.mxu0 0.0
    %1837 = vmatpush1.msra.mxu0 0.0
    %1838 = vmatprep.subr.mxu0 0.0
    %1839 = vmatpush1.msra.mxu0 0.0
    %1840 = vmatprep.subr.mxu0 0.0
    %1841 = vmatpush1.msra.mxu0 0.0
    %1842 = vmatprep.subr.mxu0 0.0
    %1843 = vmatpush1.msra.mxu0 0.0
    %1844 = vmatprep.subr.mxu0 0.0
    %1845 = vmatpush1.msra.mxu0 0.0
    %1846 = vmatprep.subr.mxu0 0.0
    %1847 = vmatpush1.msra.mxu0 0.0
    %1848 = vmatprep.subr.mxu0 0.0
    %1849 = vmatpush1.msra.mxu0 0.0
    %1850 = vmatprep.mubr.f32.mxu0 0.0
    %1851 = vmatmul.mubr.f32.gmra.mrb[0].mxu0 %v1784
    %v1852 = vpop.f32.mrb[0].mxu0
    %v1853 = vadd.f32 %v1779, %v1852
    %v1854 = vpop.f32.mrb[0].mxu0
    %1855 = vdwg.mxu0
    %1856 = vst [vmem:[#allocation2] sm:$0x3] %v1853
    // Predicated region
    $region46: #{gcn_gru_forward.1} parent=1 // pred_check
      _
    $region47: #{gcn_gru_forward.1} parent=1 // pred_check_branch
      %1858 = sbr.rel (0) target = $region49
    $region48: #{gcn_gru_forward.1} parent=1 // pred_region
      %s1860 = ssub.s32 32, 32
      %1861 = vsyncadd [#allocation3], %s1860
      %s1863 = sshll.u32 [#allocation2], 4
      %s1864 = int_to_ptr.vmem [resolvable:$true] %s1863
      %1866 = dma.vmem_to_hbm [thread:$0]  %s1864, 32, %s11, [#allocation3]
    $region49: #{gcn_gru_forward.1} parent=1 // pred_fallthru
      _
    // Predicated region
    $region50: #{gcn_gru_forward.1} parent=1 // pred_check
      _
    $region51: #{gcn_gru_forward.1} parent=1 // pred_check_branch
      %1868 = sbr.rel (0) target = $region53
    $region52: #{gcn_gru_forward.1} parent=1 // pred_region
      %1869 = dma.done [#allocation3], 32
    $region53: #{gcn_gru_forward.1} parent=1 // pred_fallthru
      _
    %1870 = vsyncpa [#allocation3], 1

</llo_original>
